<compile_context>
chip_gen: v7x
topology: tpu7x:2x2x1
jax: 0.10.0
libtpu: 0.0.40
codegen_flags: <defaults>
</compile_context>

<pallas_src>
import functools

import jax
import jax.numpy as jnp
from jax.experimental import pallas as pl
from jax.experimental.pallas import tpu as pltpu

# ---- model hyper-parameters (small, consistent with the module) -------------
VOCAB_SIZE = 64
N_EMBD = 32
N_HEAD = 4
N_LAYER = 2
BLOCK_SIZE = 8     # max sequence length (power of two)
DROPOUT = 0.0      # eval mode => identity
BATCH = 2
SEQ = 8            # T (<= BLOCK_SIZE)

HEAD_SIZE = N_EMBD // N_HEAD
_EPS = 1e-5
_NEG_INF = -1e30

# packed-weight layout constants
_EMB_ROWS = ((VOCAB_SIZE + BLOCK_SIZE + 31) // 32) * 32   # tok + pos rows, padded (96)
_LAYER_ROWS = 8 * N_EMBD                                  # wq,wk,wv,wproj (4C) + w2 (4C)
_LM_PAD = 128                                             # lane-dense logits width

_VMEM = pl.BlockSpec(memory_space=pltpu.MemorySpace.VMEM)


def _idiv(a, n):
    """Integer divide by a static n; shift when n is a power of two."""
    if n & (n - 1) == 0:
        return a >> (n.bit_length() - 1)
    return a // n


def _imod(a, n):
    """Integer modulo by a static n; AND when n is a power of two."""
    if n & (n - 1) == 0:
        return a & (n - 1)
    return a % n


def _layernorm(x, w, b):
    # x: (N, C) (or (B,T,C) in the reference); biased variance, matches nn.LayerNorm
    mu = jnp.mean(x, axis=-1, keepdims=True)
    var = jnp.mean((x - mu) ** 2, axis=-1, keepdims=True)
    return (x - mu) * jax.lax.rsqrt(var + _EPS) * w + b


# ---- Pallas kernel: full forward pass (embedding -> blocks -> lm_head) -------
def fused_transformer_kernel(idx_ref, wc_ref, w128_ref, vecs_ref, out_ref, *,
                             batch, seq):
    f32, bf16 = jnp.float32, jnp.bfloat16
    B, T = batch, seq
    BT = B * T
    C, H, hs, V = N_EMBD, N_HEAD, HEAD_SIZE, VOCAB_SIZE

    # --- fused token + position embedding: ONE 0/1 matmul against (tok|pos) ---
    ids = idx_ref[...]                                               # (BT, 1) int32
    ri = jax.lax.broadcasted_iota(jnp.int32, (BT, _EMB_ROWS), 0)
    ci = jax.lax.broadcasted_iota(jnp.int32, (BT, _EMB_ROWS), 1)
    pos_col = V + _imod(ri, T)                   # row -> position slot in the table
    sel = (ci == ids) | (ci == pos_col)          # two ones per row (token, position)
    onehot2 = jnp.where(sel, 1.0, 0.0).astype(bf16)                  # exact in bf16
    x = jnp.dot(onehot2, wc_ref[0:_EMB_ROWS, :],
                preferred_element_type=f32)                          # (BT, C) f32

    # --- constant masks, built once with shift/AND -----------------------------
    # causal AND same-batch additive mask over the flattened (BT) key axis
    qi = jax.lax.broadcasted_iota(jnp.int32, (BT, BT), 0)
    kj = jax.lax.broadcasted_iota(jnp.int32, (BT, BT), 1)
    keep = (_idiv(qi, T) == _idiv(kj, T)) & (_imod(qi, T) >= _imod(kj, T))
    amask = jnp.where(keep, 0.0, _NEG_INF).astype(f32)               # (BT, BT)
    amask = jnp.concatenate([amask] * H, axis=0)                     # (H*BT, BT)
    # head <-> channel selector for the row-stacked head layout
    hr = jax.lax.broadcasted_iota(jnp.int32, (H * BT, C), 0)
    hc = jax.lax.broadcasted_iota(jnp.int32, (H * BT, C), 1)
    hmask = jnp.where(_idiv(hr, BT) == _idiv(hc, hs), 1.0, 0.0).astype(f32)

    # ---------------- transformer blocks (static unroll over layers) ----------
    for l in range(N_LAYER):
        base = _EMB_ROWS + l * _LAYER_ROWS
        wq = wc_ref[base:base + C, :]              # (C, C) bf16, 1/sqrt(hs) folded in
        wk = wc_ref[base + C:base + 2 * C, :]
        wv = wc_ref[base + 2 * C:base + 3 * C, :]
        wp = wc_ref[base + 3 * C:base + 4 * C, :]
        w2 = wc_ref[base + 4 * C:base + 8 * C, :]  # (4C, C) bf16
        w1 = w128_ref[l]                           # (C, 4C) bf16
        vl = vecs_ref[l]                           # (8, 128) f32 packed vectors
        ln1w, ln1b = vl[0:1, 0:C], vl[1:2, 0:C]
        ln2w, ln2b = vl[2:3, 0:C], vl[3:4, 0:C]
        bproj, b2 = vl[4:5, 0:C], vl[5:6, 0:C]
        b1 = vl[6:7, 0:4 * C]

        # ---- multi-head self-attention: heads row-stacked, no lane slicing ----
        xn = _layernorm(x, ln1w, ln1b)                               # f32 (BT, C)
        xnb = xn.astype(bf16)
        q = jnp.dot(xnb, wq, preferred_element_type=f32)             # (BT, C)
        k = jnp.dot(xnb, wk, preferred_element_type=f32)
        v = jnp.dot(xnb, wv, preferred_element_type=f32)

        qs = jnp.concatenate([q] * H, axis=0) * hmask                # (H*BT, C)
        s = jax.lax.dot_general(qs.astype(bf16), k.astype(bf16),
                                (((1,), (1,)), ((), ())),
                                preferred_element_type=f32)          # (H*BT, BT)
        s = s + amask
        m = jnp.max(s, axis=-1, keepdims=True)
        e = jnp.exp(s - m)
        p = e * pl.reciprocal(jnp.sum(e, axis=-1, keepdims=True), approx=True)
        o = jnp.dot(p.astype(bf16), v.astype(bf16),
                    preferred_element_type=f32) * hmask              # (H*BT, C)
        sa = o[0:BT]
        for h in range(1, H):                      # sublane-group aligned merges
            sa = sa + o[h * BT:(h + 1) * BT]                         # (BT, C)
        sa = jnp.dot(sa.astype(bf16), wp, preferred_element_type=f32) + bproj
        x = x + sa                                                   # residual 1

        # ---- feed-forward ----
        xn2 = _layernorm(x, ln2w, ln2b)
        hid = jnp.dot(xn2.astype(bf16), w1, preferred_element_type=f32) + b1
        hid = jnp.maximum(hid, 0.0)                                  # ReLU
        ff = jnp.dot(hid.astype(bf16), w2, preferred_element_type=f32) + b2
        x = x + ff                                                   # residual 2

    # ---------------- final LayerNorm + lm_head (lane-dense (BT,128) store) ----
    vf = vecs_ref[N_LAYER]
    xf = _layernorm(x, vf[0:1, 0:C], vf[1:2, 0:C])
    wlm = w128_ref[N_LAYER]                        # (C, 128) bf16, zero-padded cols
    out_ref[...] = (jnp.dot(xf.astype(bf16), wlm, preferred_element_type=f32)
                    + vf[2:3, :])


# ---- parameter init (std=0.02 normals, zero biases, unit LN) ------------------
def init_params(key):
    std = 0.02
    C, V, L = N_EMBD, VOCAB_SIZE, N_LAYER
    kit = iter(jax.random.split(key, 6 * L + 3))

    def nrm(shape):
        # The matmul weights / embeddings ARE bf16-representable values: the
        # kernel feeds them to the MXU as bf16, the f32 reference uses the
        # exact same numbers (so only activation rounding differs).
        w = std * jax.random.normal(next(kit), shape, jnp.float32)
        return w.astype(jnp.bfloat16).astype(jnp.float32)

    wq, wk, wv, wp, w1, w2 = [], [], [], [], [], []
    for _ in range(L):
        wq.append(nrm((C, C))); wk.append(nrm((C, C))); wv.append(nrm((C, C)))
        wp.append(nrm((C, C))); w1.append(nrm((C, 4 * C))); w2.append(nrm((4 * C, C)))

    return {
        "tok_emb": nrm((V, C)),
        "pos_emb": nrm((BLOCK_SIZE, C)),
        "wq": jnp.stack(wq), "wk": jnp.stack(wk), "wv": jnp.stack(wv),
        "wproj": jnp.stack(wp), "w1": jnp.stack(w1), "w2": jnp.stack(w2),
        "ln1_w": jnp.ones((L, C), jnp.float32), "ln1_b": jnp.zeros((L, C), jnp.float32),
        "ln2_w": jnp.ones((L, C), jnp.float32), "ln2_b": jnp.zeros((L, C), jnp.float32),
        "bproj": jnp.zeros((L, C), jnp.float32),
        "b1": jnp.zeros((L, 4 * C), jnp.float32),
        "b2": jnp.zeros((L, C), jnp.float32),
        "lnf_w": jnp.ones((C,), jnp.float32), "lnf_b": jnp.zeros((C,), jnp.float32),
        "wlm": nrm((C, V)),
        "blm": jnp.zeros((V,), jnp.float32),
    }


# ---- pack the ~19 logical tensors into 3 kernel slabs (done once) -------------
def pack_params(params):
    C, V, L = N_EMBD, VOCAB_SIZE, N_LAYER
    scale = HEAD_SIZE ** -0.5
    f32, bf16 = jnp.float32, jnp.bfloat16

    # (1) all C-wide-output matmul weights + embedding tables, row-stacked (bf16)
    emb = jnp.zeros((_EMB_ROWS, C), f32)
    emb = emb.at[:V].set(params["tok_emb"]).at[V:V + BLOCK_SIZE].set(params["pos_emb"])
    blocks = [emb]
    for l in range(L):
        blocks.append(jnp.concatenate(
            [params["wq"][l] * scale,        # attention scale folded into Wq
             params["wk"][l], params["wv"][l], params["wproj"][l],
             params["w2"][l]], axis=0))      # (8C, C)
    wc = jnp.concatenate(blocks, axis=0).astype(bf16)

    # (2) all 128-wide matmul weights: per-layer W1 plus the padded lm head (bf16)
    w128 = jnp.zeros((L + 1, C, _LM_PAD), f32)
    for l in range(L):
        w128 = w128.at[l, :, :4 * C].set(params["w1"][l])
    w128 = w128.at[L, :, :V].set(params["wlm"])
    w128 = w128.astype(bf16)

    # (3) every LayerNorm weight / bias vector packed into one small f32 slab
    vecs = jnp.zeros((L + 1, 8, 128), f32)
    for l in range(L):
        vecs = vecs.at[l, 0, :C].set(params["ln1_w"][l])
        vecs = vecs.at[l, 1, :C].set(params["ln1_b"][l])
        vecs = vecs.at[l, 2, :C].set(params["ln2_w"][l])
        vecs = vecs.at[l, 3, :C].set(params["ln2_b"][l])
        vecs = vecs.at[l, 4, :C].set(params["bproj"][l])
        vecs = vecs.at[l, 5, :C].set(params["b2"][l])
        vecs = vecs.at[l, 6, :4 * C].set(params["b1"][l])
    vecs = vecs.at[L, 0, :C].set(params["lnf_w"])
    vecs = vecs.at[L, 1, :C].set(params["lnf_b"])
    vecs = vecs.at[L, 2, :V].set(params["blm"])

    return {"wc": wc, "w128": w128, "vecs": vecs}


# ---- forward pass: one fused pallas_call --------------------------------------
@jax.jit
def transformer_forward(idx, packed):
    B, T = idx.shape
    assert T <= BLOCK_SIZE and (T & (T - 1)) == 0, "T must be a power of two <= BLOCK_SIZE"
    idx_flat = idx.reshape(B * T, 1).astype(jnp.int32)
    kernel = functools.partial(fused_transformer_kernel, batch=B, seq=T)
    # TODO(synk): if B*T / n_embd / n_layer grow, add a ("parallel",) grid over
    # row-tiles (2 TensorCores on v7x) and an ("arbitrary",) layer axis so the
    # stacked weights stream through VMEM (64 MiB physical on v7x).
    logits_pad = pl.pallas_call(
        kernel,
        out_shape=jax.ShapeDtypeStruct((B * T, _LM_PAD), jnp.float32),
        in_specs=[_VMEM] * 4,
        out_specs=_VMEM,
    )(idx_flat, packed["wc"], packed["w128"], packed["vecs"])
    return logits_pad[:, :VOCAB_SIZE].reshape(B, T, VOCAB_SIZE)  # loss is None path


# ---- pure-JAX f32 reference (same weights) for a correctness check ------------
def reference_forward(idx, params):
    with jax.default_matmul_precision("float32"):
        B, T = idx.shape
        H, hs = N_HEAD, HEAD_SIZE
        x = params["tok_emb"][idx] + params["pos_emb"][:T][None]
        tril = jnp.tril(jnp.ones((T, T), bool))
        for l in range(N_LAYER):
            xn = _layernorm(x, params["ln1_w"][l], params["ln1_b"][l])
            q = xn @ params["wq"][l]
            k = xn @ params["wk"][l]
            v = xn @ params["wv"][l]
            heads = []
            for h in range(H):
                sl = slice(h * hs, (h + 1) * hs)
                wei = jnp.einsum("btd,bsd->bts", q[..., sl], k[..., sl]) * hs ** -0.5
                wei = jnp.where(tril[None], wei, -jnp.inf)
                wei = jax.nn.softmax(wei, axis=-1)
                heads.append(jnp.einsum("bts,bsd->btd", wei, v[..., sl]))
            sa = jnp.concatenate(heads, -1) @ params["wproj"][l] + params["bproj"][l]
            x = x + sa
            xn2 = _layernorm(x, params["ln2_w"][l], params["ln2_b"][l])
            hid = jnp.maximum(xn2 @ params["w1"][l] + params["b1"][l], 0.0)
            x = x + hid @ params["w2"][l] + params["b2"][l]
        xf = _layernorm(x, params["lnf_w"], params["lnf_b"])
        return xf @ params["wlm"] + params["blm"]


if __name__ == "__main__":
    key = jax.random.PRNGKey(0)
    pkey, ikey = jax.random.split(key)
    params = init_params(pkey)
    packed = pack_params(params)
    idx = jax.random.randint(ikey, (BATCH, SEQ), 0, VOCAB_SIZE, dtype=jnp.int32)

    logits = transformer_forward(idx, packed)
    jax.block_until_ready(logits)

    assert logits.shape == (BATCH, SEQ, VOCAB_SIZE)
    assert bool(jnp.all(jnp.isfinite(logits)))

    # Kernel uses bf16 MXU operands (f32 accumulate) + approx-reciprocal softmax;
    # reference is exact f32 with the same (bf16-representable) weights.
    ref = reference_forward(idx, params)
    max_err = float(jnp.max(jnp.abs(logits - ref)))
    assert bool(jnp.allclose(logits, ref, rtol=2e-2, atol=8e-3)), max_err

    print("KERNEL_OK")
</pallas_src>

<mosaic_0001>
module attributes {stable_mosaic.version = 11 : i64} {
  func.func @fused_transformer_kernel(%arg0: memref<16x1xi32, #tpu.memory_space<vmem>>, %arg1: memref<608x32xbf16, #tpu.memory_space<vmem>>, %arg2: memref<3x32x128xbf16, #tpu.memory_space<vmem>>, %arg3: memref<3x8x128xf32, #tpu.memory_space<vmem>>, %arg4: memref<16x128xf32, #tpu.memory_space<vmem>>) attributes {dimension_semantics = [], scalar_prefetch = 0 : i64, scratch_operands = 0 : i64, tpu.core_type = #tpu.core_type<tc>} {
    %c0 = arith.constant 0 : index
    %c0_0 = arith.constant 0 : index
    %0 = vector.load %arg0[%c0, %c0_0] : memref<16x1xi32, #tpu.memory_space<vmem>>, vector<16x1xi32>
    %1 = tpu.iota {dimensions = array<i32: 0>} : vector<16x96xi32>
    %2 = tpu.iota {dimensions = array<i32: 1>} : vector<16x96xi32>
    %c7_i32 = arith.constant 7 : i32
    %3 = vector.broadcast %c7_i32 : i32 to vector<16x96xi32>
    %4 = arith.andi %1, %3 : vector<16x96xi32>
    %c64_i32 = arith.constant 64 : i32
    %5 = vector.broadcast %c64_i32 : i32 to vector<16x96xi32>
    %6 = arith.addi %5, %4 : vector<16x96xi32>
    %7 = vector.broadcast %0 : vector<16x1xi32> to vector<16x96xi32>
    %8 = arith.cmpi eq, %2, %7 : vector<16x96xi32>
    %9 = arith.cmpi eq, %2, %6 : vector<16x96xi32>
    %10 = arith.ori %8, %9 : vector<16x96xi1>
    %cst = arith.constant 1.000000e+00 : f32
    %cst_1 = arith.constant 0.000000e+00 : f32
    %11 = vector.broadcast %cst : f32 to vector<16x96xf32>
    %12 = vector.broadcast %cst_1 : f32 to vector<16x96xf32>
    %13 = arith.select %10, %11, %12 : vector<16x96xi1>, vector<16x96xf32>
    %14 = arith.truncf %13 : vector<16x96xf32> to vector<16x96xbf16>
    %c0_2 = arith.constant 0 : index
    %c0_3 = arith.constant 0 : index
    %15 = vector.load %arg1[%c0_2, %c0_3] : memref<608x32xbf16, #tpu.memory_space<vmem>>, vector<96x32xbf16>
    %cst_4 = arith.constant dense<0.000000e+00> : vector<16x32xf32>
    %16 = tpu.matmul %14, %15, %cst_4 {dimension_numbers = #tpu.dot_dimension_numbers<[1], [0], [0], [1], [0, 0, 1, 1], [], []>} : vector<16x96xbf16>, vector<96x32xbf16>, vector<16x32xf32> -> vector<16x32xf32>
    %17 = tpu.iota {dimensions = array<i32: 0>} : vector<16x16xi32>
    %18 = tpu.iota {dimensions = array<i32: 1>} : vector<16x16xi32>
    %c3_i32 = arith.constant 3 : i32
    %19 = vector.broadcast %c3_i32 : i32 to vector<16x16xi32>
    %20 = arith.shrsi %17, %19 : vector<16x16xi32>
    %c3_i32_5 = arith.constant 3 : i32
    %21 = vector.broadcast %c3_i32_5 : i32 to vector<16x16xi32>
    %22 = arith.shrsi %18, %21 : vector<16x16xi32>
    %23 = arith.cmpi eq, %20, %22 : vector<16x16xi32>
    %c7_i32_6 = arith.constant 7 : i32
    %24 = vector.broadcast %c7_i32_6 : i32 to vector<16x16xi32>
    %25 = arith.andi %17, %24 : vector<16x16xi32>
    %c7_i32_7 = arith.constant 7 : i32
    %26 = vector.broadcast %c7_i32_7 : i32 to vector<16x16xi32>
    %27 = arith.andi %18, %26 : vector<16x16xi32>
    %28 = arith.cmpi sge, %25, %27 : vector<16x16xi32>
    %29 = arith.andi %23, %28 : vector<16x16xi1>
    %cst_8 = arith.constant 0.000000e+00 : f32
    %cst_9 = arith.constant -1.000000e+30 : f32
    %30 = vector.broadcast %cst_8 : f32 to vector<16x16xf32>
    %31 = vector.broadcast %cst_9 : f32 to vector<16x16xf32>
    %32 = arith.select %29, %30, %31 : vector<16x16xi1>, vector<16x16xf32>
    %33 = tpu.concatenate %32, %32, %32, %32 in 0 : vector<16x16xf32>, vector<16x16xf32>, vector<16x16xf32>, vector<16x16xf32> -> vector<64x16xf32>
    %34 = tpu.iota {dimensions = array<i32: 0>} : vector<64x32xi32>
    %35 = tpu.iota {dimensions = array<i32: 1>} : vector<64x32xi32>
    %c4_i32 = arith.constant 4 : i32
    %36 = vector.broadcast %c4_i32 : i32 to vector<64x32xi32>
    %37 = arith.shrsi %34, %36 : vector<64x32xi32>
    %c3_i32_10 = arith.constant 3 : i32
    %38 = vector.broadcast %c3_i32_10 : i32 to vector<64x32xi32>
    %39 = arith.shrsi %35, %38 : vector<64x32xi32>
    %40 = arith.cmpi eq, %37, %39 : vector<64x32xi32>
    %cst_11 = arith.constant 1.000000e+00 : f32
    %cst_12 = arith.constant 0.000000e+00 : f32
    %41 = vector.broadcast %cst_11 : f32 to vector<64x32xf32>
    %42 = vector.broadcast %cst_12 : f32 to vector<64x32xf32>
    %43 = arith.select %40, %41, %42 : vector<64x32xi1>, vector<64x32xf32>
    %c96 = arith.constant 96 : index
    %c0_13 = arith.constant 0 : index
    %44 = vector.load %arg1[%c96, %c0_13] : memref<608x32xbf16, #tpu.memory_space<vmem>>, vector<32x32xbf16>
    %c128 = arith.constant 128 : index
    %c0_14 = arith.constant 0 : index
    %45 = vector.load %arg1[%c128, %c0_14] : memref<608x32xbf16, #tpu.memory_space<vmem>>, vector<32x32xbf16>
    %c160 = arith.constant 160 : index
    %c0_15 = arith.constant 0 : index
    %46 = vector.load %arg1[%c160, %c0_15] : memref<608x32xbf16, #tpu.memory_space<vmem>>, vector<32x32xbf16>
    %c192 = arith.constant 192 : index
    %c0_16 = arith.constant 0 : index
    %47 = vector.load %arg1[%c192, %c0_16] : memref<608x32xbf16, #tpu.memory_space<vmem>>, vector<32x32xbf16>
    %c224 = arith.constant 224 : index
    %c0_17 = arith.constant 0 : index
    %48 = vector.load %arg1[%c224, %c0_17] : memref<608x32xbf16, #tpu.memory_space<vmem>>, vector<128x32xbf16>
    %c0_18 = arith.constant 0 : index
    %c0_19 = arith.constant 0 : index
    %c0_20 = arith.constant 0 : index
    %49 = vector.load %arg2[%c0_18, %c0_19, %c0_20] : memref<3x32x128xbf16, #tpu.memory_space<vmem>>, vector<1x32x128xbf16>
    %50 = vector.shape_cast %49 : vector<1x32x128xbf16> to vector<32x128xbf16>
    %c0_21 = arith.constant 0 : index
    %c0_22 = arith.constant 0 : index
    %c0_23 = arith.constant 0 : index
    %51 = vector.load %arg3[%c0_21, %c0_22, %c0_23] : memref<3x8x128xf32, #tpu.memory_space<vmem>>, vector<1x8x128xf32>
    %52 = vector.shape_cast %51 : vector<1x8x128xf32> to vector<8x128xf32>
    %53 = vector.extract_strided_slice %52 {offsets = [0, 0], sizes = [1, 32], strides = [1, 1]} : vector<8x128xf32> to vector<1x32xf32>
    %54 = vector.extract_strided_slice %52 {offsets = [1, 0], sizes = [1, 32], strides = [1, 1]} : vector<8x128xf32> to vector<1x32xf32>
    %55 = vector.extract_strided_slice %52 {offsets = [2, 0], sizes = [1, 32], strides = [1, 1]} : vector<8x128xf32> to vector<1x32xf32>
    %56 = vector.extract_strided_slice %52 {offsets = [3, 0], sizes = [1, 32], strides = [1, 1]} : vector<8x128xf32> to vector<1x32xf32>
    %57 = vector.extract_strided_slice %52 {offsets = [4, 0], sizes = [1, 32], strides = [1, 1]} : vector<8x128xf32> to vector<1x32xf32>
    %58 = vector.extract_strided_slice %52 {offsets = [5, 0], sizes = [1, 32], strides = [1, 1]} : vector<8x128xf32> to vector<1x32xf32>
    %59 = vector.extract_strided_slice %52 {offsets = [6, 0], sizes = [1, 128], strides = [1, 1]} : vector<8x128xf32> to vector<1x128xf32>
    %cst_24 = arith.constant dense<0.000000e+00> : vector<16xf32>
    %60 = vector.multi_reduction <add>, %16, %cst_24 [1] : vector<16x32xf32> to vector<16xf32>
    %61 = vector.shape_cast %60 : vector<16xf32> to vector<16x1xf32>
    %cst_25 = arith.constant 3.200000e+01 : f32
    %62 = vector.broadcast %cst_25 : f32 to vector<16x1xf32>
    %63 = arith.divf %61, %62 : vector<16x1xf32>
    %64 = vector.broadcast %63 : vector<16x1xf32> to vector<16x32xf32>
    %65 = arith.subf %16, %64 : vector<16x32xf32>
    %66 = arith.mulf %65, %65 : vector<16x32xf32>
    %cst_26 = arith.constant dense<0.000000e+00> : vector<16xf32>
    %67 = vector.multi_reduction <add>, %66, %cst_26 [1] : vector<16x32xf32> to vector<16xf32>
    %68 = vector.shape_cast %67 : vector<16xf32> to vector<16x1xf32>
    %cst_27 = arith.constant 3.200000e+01 : f32
    %69 = vector.broadcast %cst_27 : f32 to vector<16x1xf32>
    %70 = arith.divf %68, %69 : vector<16x1xf32>
    %71 = vector.broadcast %63 : vector<16x1xf32> to vector<16x32xf32>
    %72 = arith.subf %16, %71 : vector<16x32xf32>
    %cst_28 = arith.constant 9.99999974E-6 : f32
    %73 = vector.broadcast %cst_28 : f32 to vector<16x1xf32>
    %74 = arith.addf %70, %73 : vector<16x1xf32>
    %75 = math.rsqrt %74 : vector<16x1xf32>
    %76 = vector.broadcast %75 : vector<16x1xf32> to vector<16x32xf32>
    %77 = arith.mulf %72, %76 : vector<16x32xf32>
    %78 = vector.broadcast %53 : vector<1x32xf32> to vector<16x32xf32>
    %79 = arith.mulf %77, %78 : vector<16x32xf32>
    %80 = vector.broadcast %54 : vector<1x32xf32> to vector<16x32xf32>
    %81 = arith.addf %79, %80 : vector<16x32xf32>
    %82 = arith.truncf %81 : vector<16x32xf32> to vector<16x32xbf16>
    %cst_29 = arith.constant dense<0.000000e+00> : vector<16x32xf32>
    %83 = tpu.matmul %82, %44, %cst_29 {dimension_numbers = #tpu.dot_dimension_numbers<[1], [0], [0], [1], [0, 0, 1, 1], [], []>} : vector<16x32xbf16>, vector<32x32xbf16>, vector<16x32xf32> -> vector<16x32xf32>
    %cst_30 = arith.constant dense<0.000000e+00> : vector<16x32xf32>
    %84 = tpu.matmul %82, %45, %cst_30 {dimension_numbers = #tpu.dot_dimension_numbers<[1], [0], [0], [1], [0, 0, 1, 1], [], []>} : vector<16x32xbf16>, vector<32x32xbf16>, vector<16x32xf32> -> vector<16x32xf32>
    %cst_31 = arith.constant dense<0.000000e+00> : vector<16x32xf32>
    %85 = tpu.matmul %82, %46, %cst_31 {dimension_numbers = #tpu.dot_dimension_numbers<[1], [0], [0], [1], [0, 0, 1, 1], [], []>} : vector<16x32xbf16>, vector<32x32xbf16>, vector<16x32xf32> -> vector<16x32xf32>
    %86 = tpu.concatenate %83, %83, %83, %83 in 0 : vector<16x32xf32>, vector<16x32xf32>, vector<16x32xf32>, vector<16x32xf32> -> vector<64x32xf32>
    %87 = arith.mulf %86, %43 : vector<64x32xf32>
    %88 = arith.truncf %87 : vector<64x32xf32> to vector<64x32xbf16>
    %89 = arith.truncf %84 : vector<16x32xf32> to vector<16x32xbf16>
    %cst_32 = arith.constant dense<0.000000e+00> : vector<64x16xf32>
    %90 = tpu.matmul %88, %89, %cst_32 {dimension_numbers = #tpu.dot_dimension_numbers<[1], [1], [0], [0], [0, 0, 1, 0], [], []>} : vector<64x32xbf16>, vector<16x32xbf16>, vector<64x16xf32> -> vector<64x16xf32>
    %91 = arith.addf %90, %33 : vector<64x16xf32>
    %cst_33 = arith.constant dense<0xFF800000> : vector<64xf32>
    %92 = vector.multi_reduction <maximumf>, %91, %cst_33 [1] : vector<64x16xf32> to vector<64xf32>
    %93 = vector.shape_cast %92 : vector<64xf32> to vector<64x1xf32>
    %94 = vector.broadcast %93 : vector<64x1xf32> to vector<64x16xf32>
    %95 = arith.subf %91, %94 : vector<64x16xf32>
    %96 = math.exp %95 : vector<64x16xf32>
    %cst_34 = arith.constant dense<0.000000e+00> : vector<64xf32>
    %97 = vector.multi_reduction <add>, %96, %cst_34 [1] : vector<64x16xf32> to vector<64xf32>
    %98 = vector.shape_cast %97 : vector<64xf32> to vector<64x1xf32>
    %99 = tpu.reciprocal %98 {approx = true} : vector<64x1xf32> -> vector<64x1xf32>
    %100 = vector.broadcast %99 : vector<64x1xf32> to vector<64x16xf32>
    %101 = arith.mulf %96, %100 : vector<64x16xf32>
    %102 = arith.truncf %101 : vector<64x16xf32> to vector<64x16xbf16>
    %103 = arith.truncf %85 : vector<16x32xf32> to vector<16x32xbf16>
    %cst_35 = arith.constant dense<0.000000e+00> : vector<64x32xf32>
    %104 = tpu.matmul %102, %103, %cst_35 {dimension_numbers = #tpu.dot_dimension_numbers<[1], [0], [0], [1], [0, 0, 1, 1], [], []>} : vector<64x16xbf16>, vector<16x32xbf16>, vector<64x32xf32> -> vector<64x32xf32>
    %105 = arith.mulf %104, %43 : vector<64x32xf32>
    %106 = vector.extract_strided_slice %105 {offsets = [0, 0], sizes = [16, 32], strides = [1, 1]} : vector<64x32xf32> to vector<16x32xf32>
    %107 = vector.extract_strided_slice %105 {offsets = [16, 0], sizes = [16, 32], strides = [1, 1]} : vector<64x32xf32> to vector<16x32xf32>
    %108 = arith.addf %106, %107 : vector<16x32xf32>
    %109 = vector.extract_strided_slice %105 {offsets = [32, 0], sizes = [16, 32], strides = [1, 1]} : vector<64x32xf32> to vector<16x32xf32>
    %110 = arith.addf %108, %109 : vector<16x32xf32>
    %111 = vector.extract_strided_slice %105 {offsets = [48, 0], sizes = [16, 32], strides = [1, 1]} : vector<64x32xf32> to vector<16x32xf32>
    %112 = arith.addf %110, %111 : vector<16x32xf32>
    %113 = arith.truncf %112 : vector<16x32xf32> to vector<16x32xbf16>
    %cst_36 = arith.constant dense<0.000000e+00> : vector<16x32xf32>
    %114 = tpu.matmul %113, %47, %cst_36 {dimension_numbers = #tpu.dot_dimension_numbers<[1], [0], [0], [1], [0, 0, 1, 1], [], []>} : vector<16x32xbf16>, vector<32x32xbf16>, vector<16x32xf32> -> vector<16x32xf32>
    %115 = vector.broadcast %57 : vector<1x32xf32> to vector<16x32xf32>
    %116 = arith.addf %114, %115 : vector<16x32xf32>
    %117 = arith.addf %16, %116 : vector<16x32xf32>
    %cst_37 = arith.constant dense<0.000000e+00> : vector<16xf32>
    %118 = vector.multi_reduction <add>, %117, %cst_37 [1] : vector<16x32xf32> to vector<16xf32>
    %119 = vector.shape_cast %118 : vector<16xf32> to vector<16x1xf32>
    %cst_38 = arith.constant 3.200000e+01 : f32
    %120 = vector.broadcast %cst_38 : f32 to vector<16x1xf32>
    %121 = arith.divf %119, %120 : vector<16x1xf32>
    %122 = vector.broadcast %121 : vector<16x1xf32> to vector<16x32xf32>
    %123 = arith.subf %117, %122 : vector<16x32xf32>
    %124 = arith.mulf %123, %123 : vector<16x32xf32>
    %cst_39 = arith.constant dense<0.000000e+00> : vector<16xf32>
    %125 = vector.multi_reduction <add>, %124, %cst_39 [1] : vector<16x32xf32> to vector<16xf32>
    %126 = vector.shape_cast %125 : vector<16xf32> to vector<16x1xf32>
    %cst_40 = arith.constant 3.200000e+01 : f32
    %127 = vector.broadcast %cst_40 : f32 to vector<16x1xf32>
    %128 = arith.divf %126, %127 : vector<16x1xf32>
    %129 = vector.broadcast %121 : vector<16x1xf32> to vector<16x32xf32>
    %130 = arith.subf %117, %129 : vector<16x32xf32>
    %cst_41 = arith.constant 9.99999974E-6 : f32
    %131 = vector.broadcast %cst_41 : f32 to vector<16x1xf32>
    %132 = arith.addf %128, %131 : vector<16x1xf32>
    %133 = math.rsqrt %132 : vector<16x1xf32>
    %134 = vector.broadcast %133 : vector<16x1xf32> to vector<16x32xf32>
    %135 = arith.mulf %130, %134 : vector<16x32xf32>
    %136 = vector.broadcast %55 : vector<1x32xf32> to vector<16x32xf32>
    %137 = arith.mulf %135, %136 : vector<16x32xf32>
    %138 = vector.broadcast %56 : vector<1x32xf32> to vector<16x32xf32>
    %139 = arith.addf %137, %138 : vector<16x32xf32>
    %140 = arith.truncf %139 : vector<16x32xf32> to vector<16x32xbf16>
    %cst_42 = arith.constant dense<0.000000e+00> : vector<16x128xf32>
    %141 = tpu.matmul %140, %50, %cst_42 {dimension_numbers = #tpu.dot_dimension_numbers<[1], [0], [0], [1], [0, 0, 1, 1], [], []>} : vector<16x32xbf16>, vector<32x128xbf16>, vector<16x128xf32> -> vector<16x128xf32>
    %142 = vector.broadcast %59 : vector<1x128xf32> to vector<16x128xf32>
    %143 = arith.addf %141, %142 : vector<16x128xf32>
    %cst_43 = arith.constant 0.000000e+00 : f32
    %144 = vector.broadcast %cst_43 : f32 to vector<16x128xf32>
    %145 = arith.maximumf %143, %144 : vector<16x128xf32>
    %146 = arith.truncf %145 : vector<16x128xf32> to vector<16x128xbf16>
    %cst_44 = arith.constant dense<0.000000e+00> : vector<16x32xf32>
    %147 = tpu.matmul %146, %48, %cst_44 {dimension_numbers = #tpu.dot_dimension_numbers<[1], [0], [0], [1], [0, 0, 1, 1], [], []>} : vector<16x128xbf16>, vector<128x32xbf16>, vector<16x32xf32> -> vector<16x32xf32>
    %148 = vector.broadcast %58 : vector<1x32xf32> to vector<16x32xf32>
    %149 = arith.addf %147, %148 : vector<16x32xf32>
    %150 = arith.addf %117, %149 : vector<16x32xf32>
    %c352 = arith.constant 352 : index
    %c0_45 = arith.constant 0 : index
    %151 = vector.load %arg1[%c352, %c0_45] : memref<608x32xbf16, #tpu.memory_space<vmem>>, vector<32x32xbf16>
    %c384 = arith.constant 384 : index
    %c0_46 = arith.constant 0 : index
    %152 = vector.load %arg1[%c384, %c0_46] : memref<608x32xbf16, #tpu.memory_space<vmem>>, vector<32x32xbf16>
    %c416 = arith.constant 416 : index
    %c0_47 = arith.constant 0 : index
    %153 = vector.load %arg1[%c416, %c0_47] : memref<608x32xbf16, #tpu.memory_space<vmem>>, vector<32x32xbf16>
    %c448 = arith.constant 448 : index
    %c0_48 = arith.constant 0 : index
    %154 = vector.load %arg1[%c448, %c0_48] : memref<608x32xbf16, #tpu.memory_space<vmem>>, vector<32x32xbf16>
    %c480 = arith.constant 480 : index
    %c0_49 = arith.constant 0 : index
    %155 = vector.load %arg1[%c480, %c0_49] : memref<608x32xbf16, #tpu.memory_space<vmem>>, vector<128x32xbf16>
    %c1 = arith.constant 1 : index
    %c0_50 = arith.constant 0 : index
    %c0_51 = arith.constant 0 : index
    %156 = vector.load %arg2[%c1, %c0_50, %c0_51] : memref<3x32x128xbf16, #tpu.memory_space<vmem>>, vector<1x32x128xbf16>
    %157 = vector.shape_cast %156 : vector<1x32x128xbf16> to vector<32x128xbf16>
    %c1_52 = arith.constant 1 : index
    %c0_53 = arith.constant 0 : index
    %c0_54 = arith.constant 0 : index
    %158 = vector.load %arg3[%c1_52, %c0_53, %c0_54] : memref<3x8x128xf32, #tpu.memory_space<vmem>>, vector<1x8x128xf32>
    %159 = vector.shape_cast %158 : vector<1x8x128xf32> to vector<8x128xf32>
    %160 = vector.extract_strided_slice %159 {offsets = [0, 0], sizes = [1, 32], strides = [1, 1]} : vector<8x128xf32> to vector<1x32xf32>
    %161 = vector.extract_strided_slice %159 {offsets = [1, 0], sizes = [1, 32], strides = [1, 1]} : vector<8x128xf32> to vector<1x32xf32>
    %162 = vector.extract_strided_slice %159 {offsets = [2, 0], sizes = [1, 32], strides = [1, 1]} : vector<8x128xf32> to vector<1x32xf32>
    %163 = vector.extract_strided_slice %159 {offsets = [3, 0], sizes = [1, 32], strides = [1, 1]} : vector<8x128xf32> to vector<1x32xf32>
    %164 = vector.extract_strided_slice %159 {offsets = [4, 0], sizes = [1, 32], strides = [1, 1]} : vector<8x128xf32> to vector<1x32xf32>
    %165 = vector.extract_strided_slice %159 {offsets = [5, 0], sizes = [1, 32], strides = [1, 1]} : vector<8x128xf32> to vector<1x32xf32>
    %166 = vector.extract_strided_slice %159 {offsets = [6, 0], sizes = [1, 128], strides = [1, 1]} : vector<8x128xf32> to vector<1x128xf32>
    %cst_55 = arith.constant dense<0.000000e+00> : vector<16xf32>
    %167 = vector.multi_reduction <add>, %150, %cst_55 [1] : vector<16x32xf32> to vector<16xf32>
    %168 = vector.shape_cast %167 : vector<16xf32> to vector<16x1xf32>
    %cst_56 = arith.constant 3.200000e+01 : f32
    %169 = vector.broadcast %cst_56 : f32 to vector<16x1xf32>
    %170 = arith.divf %168, %169 : vector<16x1xf32>
    %171 = vector.broadcast %170 : vector<16x1xf32> to vector<16x32xf32>
    %172 = arith.subf %150, %171 : vector<16x32xf32>
    %173 = arith.mulf %172, %172 : vector<16x32xf32>
    %cst_57 = arith.constant dense<0.000000e+00> : vector<16xf32>
    %174 = vector.multi_reduction <add>, %173, %cst_57 [1] : vector<16x32xf32> to vector<16xf32>
    %175 = vector.shape_cast %174 : vector<16xf32> to vector<16x1xf32>
    %cst_58 = arith.constant 3.200000e+01 : f32
    %176 = vector.broadcast %cst_58 : f32 to vector<16x1xf32>
    %177 = arith.divf %175, %176 : vector<16x1xf32>
    %178 = vector.broadcast %170 : vector<16x1xf32> to vector<16x32xf32>
    %179 = arith.subf %150, %178 : vector<16x32xf32>
    %cst_59 = arith.constant 9.99999974E-6 : f32
    %180 = vector.broadcast %cst_59 : f32 to vector<16x1xf32>
    %181 = arith.addf %177, %180 : vector<16x1xf32>
    %182 = math.rsqrt %181 : vector<16x1xf32>
    %183 = vector.broadcast %182 : vector<16x1xf32> to vector<16x32xf32>
    %184 = arith.mulf %179, %183 : vector<16x32xf32>
    %185 = vector.broadcast %160 : vector<1x32xf32> to vector<16x32xf32>
    %186 = arith.mulf %184, %185 : vector<16x32xf32>
    %187 = vector.broadcast %161 : vector<1x32xf32> to vector<16x32xf32>
    %188 = arith.addf %186, %187 : vector<16x32xf32>
    %189 = arith.truncf %188 : vector<16x32xf32> to vector<16x32xbf16>
    %cst_60 = arith.constant dense<0.000000e+00> : vector<16x32xf32>
    %190 = tpu.matmul %189, %151, %cst_60 {dimension_numbers = #tpu.dot_dimension_numbers<[1], [0], [0], [1], [0, 0, 1, 1], [], []>} : vector<16x32xbf16>, vector<32x32xbf16>, vector<16x32xf32> -> vector<16x32xf32>
    %cst_61 = arith.constant dense<0.000000e+00> : vector<16x32xf32>
    %191 = tpu.matmul %189, %152, %cst_61 {dimension_numbers = #tpu.dot_dimension_numbers<[1], [0], [0], [1], [0, 0, 1, 1], [], []>} : vector<16x32xbf16>, vector<32x32xbf16>, vector<16x32xf32> -> vector<16x32xf32>
    %cst_62 = arith.constant dense<0.000000e+00> : vector<16x32xf32>
    %192 = tpu.matmul %189, %153, %cst_62 {dimension_numbers = #tpu.dot_dimension_numbers<[1], [0], [0], [1], [0, 0, 1, 1], [], []>} : vector<16x32xbf16>, vector<32x32xbf16>, vector<16x32xf32> -> vector<16x32xf32>
    %193 = tpu.concatenate %190, %190, %190, %190 in 0 : vector<16x32xf32>, vector<16x32xf32>, vector<16x32xf32>, vector<16x32xf32> -> vector<64x32xf32>
    %194 = arith.mulf %193, %43 : vector<64x32xf32>
    %195 = arith.truncf %194 : vector<64x32xf32> to vector<64x32xbf16>
    %196 = arith.truncf %191 : vector<16x32xf32> to vector<16x32xbf16>
    %cst_63 = arith.constant dense<0.000000e+00> : vector<64x16xf32>
    %197 = tpu.matmul %195, %196, %cst_63 {dimension_numbers = #tpu.dot_dimension_numbers<[1], [1], [0], [0], [0, 0, 1, 0], [], []>} : vector<64x32xbf16>, vector<16x32xbf16>, vector<64x16xf32> -> vector<64x16xf32>
    %198 = arith.addf %197, %33 : vector<64x16xf32>
    %cst_64 = arith.constant dense<0xFF800000> : vector<64xf32>
    %199 = vector.multi_reduction <maximumf>, %198, %cst_64 [1] : vector<64x16xf32> to vector<64xf32>
    %200 = vector.shape_cast %199 : vector<64xf32> to vector<64x1xf32>
    %201 = vector.broadcast %200 : vector<64x1xf32> to vector<64x16xf32>
    %202 = arith.subf %198, %201 : vector<64x16xf32>
    %203 = math.exp %202 : vector<64x16xf32>
    %cst_65 = arith.constant dense<0.000000e+00> : vector<64xf32>
    %204 = vector.multi_reduction <add>, %203, %cst_65 [1] : vector<64x16xf32> to vector<64xf32>
    %205 = vector.shape_cast %204 : vector<64xf32> to vector<64x1xf32>
    %206 = tpu.reciprocal %205 {approx = true} : vector<64x1xf32> -> vector<64x1xf32>
    %207 = vector.broadcast %206 : vector<64x1xf32> to vector<64x16xf32>
    %208 = arith.mulf %203, %207 : vector<64x16xf32>
    %209 = arith.truncf %208 : vector<64x16xf32> to vector<64x16xbf16>
    %210 = arith.truncf %192 : vector<16x32xf32> to vector<16x32xbf16>
    %cst_66 = arith.constant dense<0.000000e+00> : vector<64x32xf32>
    %211 = tpu.matmul %209, %210, %cst_66 {dimension_numbers = #tpu.dot_dimension_numbers<[1], [0], [0], [1], [0, 0, 1, 1], [], []>} : vector<64x16xbf16>, vector<16x32xbf16>, vector<64x32xf32> -> vector<64x32xf32>
    %212 = arith.mulf %211, %43 : vector<64x32xf32>
    %213 = vector.extract_strided_slice %212 {offsets = [0, 0], sizes = [16, 32], strides = [1, 1]} : vector<64x32xf32> to vector<16x32xf32>
    %214 = vector.extract_strided_slice %212 {offsets = [16, 0], sizes = [16, 32], strides = [1, 1]} : vector<64x32xf32> to vector<16x32xf32>
    %215 = arith.addf %213, %214 : vector<16x32xf32>
    %216 = vector.extract_strided_slice %212 {offsets = [32, 0], sizes = [16, 32], strides = [1, 1]} : vector<64x32xf32> to vector<16x32xf32>
    %217 = arith.addf %215, %216 : vector<16x32xf32>
    %218 = vector.extract_strided_slice %212 {offsets = [48, 0], sizes = [16, 32], strides = [1, 1]} : vector<64x32xf32> to vector<16x32xf32>
    %219 = arith.addf %217, %218 : vector<16x32xf32>
    %220 = arith.truncf %219 : vector<16x32xf32> to vector<16x32xbf16>
    %cst_67 = arith.constant dense<0.000000e+00> : vector<16x32xf32>
    %221 = tpu.matmul %220, %154, %cst_67 {dimension_numbers = #tpu.dot_dimension_numbers<[1], [0], [0], [1], [0, 0, 1, 1], [], []>} : vector<16x32xbf16>, vector<32x32xbf16>, vector<16x32xf32> -> vector<16x32xf32>
    %222 = vector.broadcast %164 : vector<1x32xf32> to vector<16x32xf32>
    %223 = arith.addf %221, %222 : vector<16x32xf32>
    %224 = arith.addf %150, %223 : vector<16x32xf32>
    %cst_68 = arith.constant dense<0.000000e+00> : vector<16xf32>
    %225 = vector.multi_reduction <add>, %224, %cst_68 [1] : vector<16x32xf32> to vector<16xf32>
    %226 = vector.shape_cast %225 : vector<16xf32> to vector<16x1xf32>
    %cst_69 = arith.constant 3.200000e+01 : f32
    %227 = vector.broadcast %cst_69 : f32 to vector<16x1xf32>
    %228 = arith.divf %226, %227 : vector<16x1xf32>
    %229 = vector.broadcast %228 : vector<16x1xf32> to vector<16x32xf32>
    %230 = arith.subf %224, %229 : vector<16x32xf32>
    %231 = arith.mulf %230, %230 : vector<16x32xf32>
    %cst_70 = arith.constant dense<0.000000e+00> : vector<16xf32>
    %232 = vector.multi_reduction <add>, %231, %cst_70 [1] : vector<16x32xf32> to vector<16xf32>
    %233 = vector.shape_cast %232 : vector<16xf32> to vector<16x1xf32>
    %cst_71 = arith.constant 3.200000e+01 : f32
    %234 = vector.broadcast %cst_71 : f32 to vector<16x1xf32>
    %235 = arith.divf %233, %234 : vector<16x1xf32>
    %236 = vector.broadcast %228 : vector<16x1xf32> to vector<16x32xf32>
    %237 = arith.subf %224, %236 : vector<16x32xf32>
    %cst_72 = arith.constant 9.99999974E-6 : f32
    %238 = vector.broadcast %cst_72 : f32 to vector<16x1xf32>
    %239 = arith.addf %235, %238 : vector<16x1xf32>
    %240 = math.rsqrt %239 : vector<16x1xf32>
    %241 = vector.broadcast %240 : vector<16x1xf32> to vector<16x32xf32>
    %242 = arith.mulf %237, %241 : vector<16x32xf32>
    %243 = vector.broadcast %162 : vector<1x32xf32> to vector<16x32xf32>
    %244 = arith.mulf %242, %243 : vector<16x32xf32>
    %245 = vector.broadcast %163 : vector<1x32xf32> to vector<16x32xf32>
    %246 = arith.addf %244, %245 : vector<16x32xf32>
    %247 = arith.truncf %246 : vector<16x32xf32> to vector<16x32xbf16>
    %cst_73 = arith.constant dense<0.000000e+00> : vector<16x128xf32>
    %248 = tpu.matmul %247, %157, %cst_73 {dimension_numbers = #tpu.dot_dimension_numbers<[1], [0], [0], [1], [0, 0, 1, 1], [], []>} : vector<16x32xbf16>, vector<32x128xbf16>, vector<16x128xf32> -> vector<16x128xf32>
    %249 = vector.broadcast %166 : vector<1x128xf32> to vector<16x128xf32>
    %250 = arith.addf %248, %249 : vector<16x128xf32>
    %cst_74 = arith.constant 0.000000e+00 : f32
    %251 = vector.broadcast %cst_74 : f32 to vector<16x128xf32>
    %252 = arith.maximumf %250, %251 : vector<16x128xf32>
    %253 = arith.truncf %252 : vector<16x128xf32> to vector<16x128xbf16>
    %cst_75 = arith.constant dense<0.000000e+00> : vector<16x32xf32>
    %254 = tpu.matmul %253, %155, %cst_75 {dimension_numbers = #tpu.dot_dimension_numbers<[1], [0], [0], [1], [0, 0, 1, 1], [], []>} : vector<16x128xbf16>, vector<128x32xbf16>, vector<16x32xf32> -> vector<16x32xf32>
    %255 = vector.broadcast %165 : vector<1x32xf32> to vector<16x32xf32>
    %256 = arith.addf %254, %255 : vector<16x32xf32>
    %257 = arith.addf %224, %256 : vector<16x32xf32>
    %c2 = arith.constant 2 : index
    %c0_76 = arith.constant 0 : index
    %c0_77 = arith.constant 0 : index
    %258 = vector.load %arg3[%c2, %c0_76, %c0_77] : memref<3x8x128xf32, #tpu.memory_space<vmem>>, vector<1x8x128xf32>
    %259 = vector.shape_cast %258 : vector<1x8x128xf32> to vector<8x128xf32>
    %260 = vector.extract_strided_slice %259 {offsets = [0, 0], sizes = [1, 32], strides = [1, 1]} : vector<8x128xf32> to vector<1x32xf32>
    %261 = vector.extract_strided_slice %259 {offsets = [1, 0], sizes = [1, 32], strides = [1, 1]} : vector<8x128xf32> to vector<1x32xf32>
    %cst_78 = arith.constant dense<0.000000e+00> : vector<16xf32>
    %262 = vector.multi_reduction <add>, %257, %cst_78 [1] : vector<16x32xf32> to vector<16xf32>
    %263 = vector.shape_cast %262 : vector<16xf32> to vector<16x1xf32>
    %cst_79 = arith.constant 3.200000e+01 : f32
    %264 = vector.broadcast %cst_79 : f32 to vector<16x1xf32>
    %265 = arith.divf %263, %264 : vector<16x1xf32>
    %266 = vector.broadcast %265 : vector<16x1xf32> to vector<16x32xf32>
    %267 = arith.subf %257, %266 : vector<16x32xf32>
    %268 = arith.mulf %267, %267 : vector<16x32xf32>
    %cst_80 = arith.constant dense<0.000000e+00> : vector<16xf32>
    %269 = vector.multi_reduction <add>, %268, %cst_80 [1] : vector<16x32xf32> to vector<16xf32>
    %270 = vector.shape_cast %269 : vector<16xf32> to vector<16x1xf32>
    %cst_81 = arith.constant 3.200000e+01 : f32
    %271 = vector.broadcast %cst_81 : f32 to vector<16x1xf32>
    %272 = arith.divf %270, %271 : vector<16x1xf32>
    %273 = vector.broadcast %265 : vector<16x1xf32> to vector<16x32xf32>
    %274 = arith.subf %257, %273 : vector<16x32xf32>
    %cst_82 = arith.constant 9.99999974E-6 : f32
    %275 = vector.broadcast %cst_82 : f32 to vector<16x1xf32>
    %276 = arith.addf %272, %275 : vector<16x1xf32>
    %277 = math.rsqrt %276 : vector<16x1xf32>
    %278 = vector.broadcast %277 : vector<16x1xf32> to vector<16x32xf32>
    %279 = arith.mulf %274, %278 : vector<16x32xf32>
    %280 = vector.broadcast %260 : vector<1x32xf32> to vector<16x32xf32>
    %281 = arith.mulf %279, %280 : vector<16x32xf32>
    %282 = vector.broadcast %261 : vector<1x32xf32> to vector<16x32xf32>
    %283 = arith.addf %281, %282 : vector<16x32xf32>
    %c2_83 = arith.constant 2 : index
    %c0_84 = arith.constant 0 : index
    %c0_85 = arith.constant 0 : index
    %284 = vector.load %arg2[%c2_83, %c0_84, %c0_85] : memref<3x32x128xbf16, #tpu.memory_space<vmem>>, vector<1x32x128xbf16>
    %285 = vector.shape_cast %284 : vector<1x32x128xbf16> to vector<32x128xbf16>
    %286 = arith.truncf %283 : vector<16x32xf32> to vector<16x32xbf16>
    %cst_86 = arith.constant dense<0.000000e+00> : vector<16x128xf32>
    %287 = tpu.matmul %286, %285, %cst_86 {dimension_numbers = #tpu.dot_dimension_numbers<[1], [0], [0], [1], [0, 0, 1, 1], [], []>} : vector<16x32xbf16>, vector<32x128xbf16>, vector<16x128xf32> -> vector<16x128xf32>
    %288 = vector.extract_strided_slice %259 {offsets = [2, 0], sizes = [1, 128], strides = [1, 1]} : vector<8x128xf32> to vector<1x128xf32>
    %289 = vector.broadcast %288 : vector<1x128xf32> to vector<16x128xf32>
    %290 = arith.addf %287, %289 : vector<16x128xf32>
    %c0_87 = arith.constant 0 : index
    %c0_88 = arith.constant 0 : index
    %291 = vector.load %arg4[%c0_87, %c0_88] : memref<16x128xf32, #tpu.memory_space<vmem>>, vector<16x128xf32>
    tpu.vector_store %arg4[%c0_87, %c0_88], %290 {strides = array<i32>} : memref<16x128xf32, #tpu.memory_space<vmem>>, vector<16x128xf32>,
    return
  }
}

</mosaic_0001>

<llo_original>
// kernel: transformer_forward.1
$region0: #{transformer_forward.1}
  #allocation0 [shape = 'u32[]', space=smem, size = 0x4, offset = 0x4, fixed_abs, tag = 'smem constant byte address 0x4 - core index']
  #allocation1 [shape = 'u32[144,128]{1,0:T(1,128)}', space=vmem, size = 0x12000, scoped, tag = 'internal scratch']
  %s0 = inlined_call_operand.vmem [shape: s32[16,1], index: 0, kind: input, shape index: {}]
  %s1 = inlined_call_operand.vmem [shape: bf16[608,32], index: 1, kind: input, shape index: {}]
  %s2 = inlined_call_operand.vmem [shape: bf16[3,32,128], index: 2, kind: input, shape index: {}]
  %s3 = inlined_call_operand.vmem [shape: f32[3,8,128], index: 3, kind: input, shape index: {}]
  %s4 = inlined_call_operand.vmem [shape: f32[16,128], index: 4, kind: output, shape index: {}]
  %s5 = sld [smem:[#allocation0]]
  $region26: #{transformer_forward.1} parent=0
    _
  %s7 = ssub.s32 1, %s5
  %s8 = scalar_select 0, %s7, %s5
  // Predicated region
  $region2: #{transformer_forward.1} parent=0 // pred_check
    _
  $region3: #{transformer_forward.1} parent=0 // pred_check_branch
    %10 = sbr.rel (0) target = $region5
  $region4: #{transformer_forward.1} parent=0 // pred_region
    _
  $region5: #{transformer_forward.1} parent=0 // pred_fallthru
    _
  // Predicated region
  $region6: #{transformer_forward.1} parent=0 // pred_check
    _
  $region7: #{transformer_forward.1} parent=0 // pred_check_branch
    %12 = sbr.rel (0) target = $region9
  $region8: #{transformer_forward.1} parent=0 // pred_region
    _
  $region9: #{transformer_forward.1} parent=0 // pred_fallthru
    _
  // Predicated region
  $region10: #{transformer_forward.1} parent=0 // pred_check
    _
  $region11: #{transformer_forward.1} parent=0 // pred_check_branch
    %14 = sbr.rel (0) target = $region13
  $region12: #{transformer_forward.1} parent=0 // pred_region
    _
  $region13: #{transformer_forward.1} parent=0 // pred_fallthru
    _
  // Predicated region
  $region14: #{transformer_forward.1} parent=0 // pred_check
    _
  $region15: #{transformer_forward.1} parent=0 // pred_check_branch
    %16 = sbr.rel (0) target = $region17
  $region16: #{transformer_forward.1} parent=0 // pred_region
    _
  $region17: #{transformer_forward.1} parent=0 // pred_fallthru
    _
  %v18 = vld [vmem:[%s0] sm:$0xff]
  %v19 = vld [vmem:[%s0 + $0x8] sm:$0xff]
  %v20 = vlaneseq
  %v21 = vshrl.u32 %v20, 7
  %v22 = vadd.s32 %v21, 8
  %v23 = vlaneseq
  %v24 = vand.u32 %v23, 127
  %v25 = vand.u32 %v21, 7
  %v26 = vand.u32 %v22, 7
  %v27 = vadd.s32 %v25, 64
  %v28 = vadd.s32 %v26, 64
  %29 = vset.pattern.permute.xlu0 0
  %30 = vperm.xlu0 %29, %v18
  %v31 = vpop.permute.xlu0 %30
  %32 = vset.pattern.permute.xlu0 0
  %33 = vperm.xlu0 %32, %v19
  %v34 = vpop.permute.xlu0 %33
  %vm35 = vcmp.eq.s32.totalorder %v24, %v31
  %vm36 = vcmp.eq.s32.totalorder %v24, %v34
  %vm37 = vcmp.eq.s32.totalorder %v24, %v27
  %vm38 = vcmp.eq.s32.totalorder %v24, %v28
  %vm39 = vmor %vm35, %vm37
  %vm40 = vmor %vm36, %vm38
  %v41 = vsel %vm39, 1.0, 0.0
  %v42 = vsel %vm40, 1.0, 0.0
  %v43 = vpack.c.bf16 %v42, %v41
  %v44 = vld [vmem:[%s1] sm:$0xf]
  %v45 = vld [vmem:[%s1 + $0x4] sm:$0xf]
  %v46 = vld [vmem:[%s1 + $0x8] sm:$0xf]
  %v47 = vld [vmem:[%s1 + $0xc] sm:$0xf]
  %v48 = vld [vmem:[%s1 + $0x10] sm:$0xf]
  %v49 = vld [vmem:[%s1 + $0x14] sm:$0xf]
  %v50 = vld [vmem:[%s1 + $0x18] sm:$0xf]
  %v51 = vld [vmem:[%s1 + $0x1c] sm:$0xf]
  %v52 = vld [vmem:[%s1 + $0x20] sm:$0xf]
  %v53 = vld [vmem:[%s1 + $0x24] sm:$0xf]
  %v54 = vld [vmem:[%s1 + $0x28] sm:$0xf]
  %v55 = vld [vmem:[%s1 + $0x2c] sm:$0xf]
  %v68 = vunpack.c.l.b16 %v44
  %v69 = vunpack.c.l.b16 %v45
  %v70 = vunpack.c.l.b16 %v46
  %v71 = vunpack.c.l.b16 %v47
  %v72 = vunpack.c.l.b16 %v48
  %v73 = vunpack.c.l.b16 %v49
  %v74 = vunpack.c.l.b16 %v50
  %v75 = vunpack.c.l.b16 %v51
  %v76 = vunpack.c.l.b16 %v52
  %v77 = vunpack.c.l.b16 %v53
  %v78 = vunpack.c.l.b16 %v54
  %v79 = vunpack.c.l.b16 %v55
  %v80 = vpack.c.b16 %v69, %v68
  %v81 = vpack.c.b16 %v71, %v70
  %v82 = vpack.c.b16 %v73, %v72
  %v83 = vpack.c.b16 %v75, %v74
  %v84 = vpack.c.b16 %v77, %v76
  %v85 = vpack.c.b16 %v79, %v78
  %vm92 = vcmask 785408
  %v94 = vsel %vm92, %v43, 0
  %96 = vmatprep.subr.bf16.mxu0 0
  %97 = vmatpush1.bf16.msra.mxu0 %v80
  %98 = vmatprep.subr.bf16.mxu0 0
  %99 = vmatpush1.bf16.msra.mxu0 %v81
  %100 = vmatprep.subr.bf16.mxu0 0
  %101 = vmatpush1.bf16.msra.mxu0 %v82
  %102 = vmatprep.subr.bf16.mxu0 0
  %103 = vmatpush1.bf16.msra.mxu0 %v83
  %104 = vmatprep.subr.bf16.mxu0 0
  %105 = vmatpush1.bf16.msra.mxu0 %v84
  %106 = vmatprep.subr.bf16.mxu0 0
  %107 = vmatpush1.bf16.msra.mxu0 %v85
  %108 = vmatprep.subr.bf16.mxu0 0
  %109 = vmatpush1.bf16.msra.mxu0 0
  %110 = vmatprep.subr.bf16.mxu0 0
  %111 = vmatpush1.bf16.msra.mxu0 0
  %112 = vmatprep.subr.bf16.mxu0 0
  %113 = vmatpush1.bf16.msra.mxu0 0
  %114 = vmatprep.subr.bf16.mxu0 0
  %115 = vmatpush1.bf16.msra.mxu0 0
  %116 = vmatprep.subr.bf16.mxu0 0
  %117 = vmatpush1.bf16.msra.mxu0 0
  %118 = vmatprep.subr.bf16.mxu0 0
  %119 = vmatpush1.bf16.msra.mxu0 0
  %120 = vmatprep.subr.bf16.mxu0 0
  %121 = vmatpush1.bf16.msra.mxu0 0
  %122 = vmatprep.subr.bf16.mxu0 0
  %123 = vmatpush1.bf16.msra.mxu0 0
  %124 = vmatprep.subr.bf16.mxu0 0
  %125 = vmatpush1.bf16.msra.mxu0 0
  %126 = vmatprep.subr.bf16.mxu0 0
  %127 = vmatpush1.bf16.msra.mxu0 0
  %128 = vmatprep.mubr.bf16.mxu0 0
  %129 = vmatmul.mubr.bf16.gmra.mrb[0].mxu0 %v94
  %v130 = vpop.f32.mrb[0].mxu0
  %v131 = vadd.f32 0.0, %v130
  %v132 = vpop.f32.mrb[0].mxu0
  %v133 = vpop.f32.mrb[0].mxu0
  %v134 = vadd.f32 0.0, %v133
  %v135 = vpop.f32.mrb[0].mxu0
  %136 = vdwg.mxu0
  %v137 = vshra.s32 %v21, 3
  %v138 = vshra.s32 %v22, 3
  %v139 = vshra.s32 %v24, 3
  %vm140 = vcmp.eq.s32.totalorder %v137, %v139
  %vm141 = vcmp.eq.s32.totalorder %v138, %v139
  %v142 = vand.u32 %v24, 7
  %vm143 = vcmp.ge.s32.totalorder %v25, %v142
  %vm144 = vcmp.ge.s32.totalorder %v26, %v142
  %vm145 = vmand %vm140, %vm143
  %vm146 = vmand %vm141, %vm144
  %v147 = vsel %vm145, 0.0, -1e+30
  %v148 = vsel %vm146, 0.0, -1e+30
  %v149 = vadd.s32 %v21, 16
  %v150 = vadd.s32 %v21, 24
  %v151 = vadd.s32 %v21, 32
  %v152 = vadd.s32 %v21, 40
  %v153 = vadd.s32 %v21, 48
  %v154 = vadd.s32 %v21, 56
  %v155 = vshra.s32 %v21, 4
  %v156 = vshra.s32 %v22, 4
  %v157 = vshra.s32 %v149, 4
  %v158 = vshra.s32 %v150, 4
  %v159 = vshra.s32 %v151, 4
  %v160 = vshra.s32 %v152, 4
  %v161 = vshra.s32 %v153, 4
  %v162 = vshra.s32 %v154, 4
  %vm163 = vcmp.eq.s32.totalorder %v155, %v139
  %vm164 = vcmp.eq.s32.totalorder %v156, %v139
  %vm165 = vcmp.eq.s32.totalorder %v157, %v139
  %vm166 = vcmp.eq.s32.totalorder %v158, %v139
  %vm167 = vcmp.eq.s32.totalorder %v159, %v139
  %vm168 = vcmp.eq.s32.totalorder %v160, %v139
  %vm169 = vcmp.eq.s32.totalorder %v161, %v139
  %vm170 = vcmp.eq.s32.totalorder %v162, %v139
  %v171 = vsel %vm163, 1.0, 0.0
  %v172 = vsel %vm164, 1.0, 0.0
  %v173 = vsel %vm165, 1.0, 0.0
  %v174 = vsel %vm166, 1.0, 0.0
  %v175 = vsel %vm167, 1.0, 0.0
  %v176 = vsel %vm168, 1.0, 0.0
  %v177 = vsel %vm169, 1.0, 0.0
  %v178 = vsel %vm170, 1.0, 0.0
  %v179 = vld [vmem:[%s1 + $0x30] sm:$0xf]
  %v180 = vld [vmem:[%s1 + $0x34] sm:$0xf]
  %v181 = vld [vmem:[%s1 + $0x38] sm:$0xf]
  %v182 = vld [vmem:[%s1 + $0x3c] sm:$0xf]
  %v183 = vld [vmem:[%s1 + $0x40] sm:$0xf]
  %v184 = vld [vmem:[%s1 + $0x44] sm:$0xf]
  %v185 = vld [vmem:[%s1 + $0x48] sm:$0xf]
  %v186 = vld [vmem:[%s1 + $0x4c] sm:$0xf]
  %v187 = vld [vmem:[%s1 + $0x50] sm:$0xf]
  %v188 = vld [vmem:[%s1 + $0x54] sm:$0xf]
  %v189 = vld [vmem:[%s1 + $0x58] sm:$0xf]
  %v190 = vld [vmem:[%s1 + $0x5c] sm:$0xf]
  %v191 = vld [vmem:[%s1 + $0x60] sm:$0xf]
  %v192 = vld [vmem:[%s1 + $0x64] sm:$0xf]
  %v193 = vld [vmem:[%s1 + $0x68] sm:$0xf]
  %v194 = vld [vmem:[%s1 + $0x6c] sm:$0xf]
  %v195 = vld [vmem:[%s1 + $0x70] sm:$0xf]
  %v196 = vld [vmem:[%s1 + $0x74] sm:$0xf]
  %v197 = vld [vmem:[%s1 + $0x78] sm:$0xf]
  %v198 = vld [vmem:[%s1 + $0x7c] sm:$0xf]
  %v199 = vld [vmem:[%s1 + $0x80] sm:$0xf]
  %v200 = vld [vmem:[%s1 + $0x84] sm:$0xf]
  %v201 = vld [vmem:[%s1 + $0x88] sm:$0xf]
  %v202 = vld [vmem:[%s1 + $0x8c] sm:$0xf]
  %v203 = vld [vmem:[%s1 + $0x90] sm:$0xf]
  %v204 = vld [vmem:[%s1 + $0x94] sm:$0xf]
  %v205 = vld [vmem:[%s1 + $0x98] sm:$0xf]
  %v206 = vld [vmem:[%s1 + $0x9c] sm:$0xf]
  %v207 = vld [vmem:[%s1 + $0xa0] sm:$0xf]
  %v208 = vld [vmem:[%s1 + $0xa4] sm:$0xf]
  %v209 = vld [vmem:[%s1 + $0xa8] sm:$0xf]
  %v210 = vld [vmem:[%s1 + $0xac] sm:$0xf]
  %v211 = vld [vmem:[%s2] sm:$0xf]
  %v212 = vld [vmem:[%s2 + $0x4] sm:$0xf]
  %v213 = vld [vmem:[%s2 + $0x8] sm:$0xf]
  %v214 = vld [vmem:[%s2 + $0xc] sm:$0xf]
  %v215 = vld [vmem:[%s3] sm:$0xff]
  %vm216 = vcmask 261120
  %v217 = vsel %vm216, %v131, 0.0
  %218 = vadd.xlane.f32.xlu0 %v217
  %v219 = vpop.xlane.xlu0 %218
  %v220 = vsel %vm216, %v134, 0.0
  %221 = vadd.xlane.f32.xlu0 %v220
  %v222 = vpop.xlane.xlu0 %221
  %v223 = vrcp.pop 32.0
  %v224 = vmul.f32 %v219, %v223
  %v225 = vmul.f32 %v222, %v223
  %v226 = vsub.f32 %v131, %v224
  %v227 = vsub.f32 %v134, %v225
  %v228 = vmul.f32 %v226, %v226
  %v229 = vmul.f32 %v227, %v227
  %v230 = vsel %vm216, %v228, 0.0
  %231 = vadd.xlane.f32.xlu0 %v230
  %v232 = vpop.xlane.xlu0 %231
  %v233 = vsel %vm216, %v229, 0.0
  %234 = vadd.xlane.f32.xlu0 %v233
  %v235 = vpop.xlane.xlu0 %234
  %v236 = vmul.f32 %v232, %v223
  %v237 = vmul.f32 %v235, %v223
  %v238 = vadd.f32 %v236, 1e-05
  %v239 = vadd.f32 %v237, 1e-05
  %v240 = vrsqrt.pop %v238
  %v241 = vrsqrt.pop %v239
  %v242 = vmul.f32 %v226, %v240
  %v243 = vmul.f32 %v227, %v241
  %v244 = vlaneseq
  %v245 = vshrl.u32 %v244, 7
  %v246 = vsub.s32 0, %v245
  %v247 = vrot.slane %v215, %v246
  %v248 = vmul.f32 %v242, %v247
  %v249 = vmul.f32 %v243, %v247
  %v250 = vlaneseq
  %v251 = vshrl.u32 %v250, 7
  %v252 = vsub.s32 1, %v251
  %v253 = vrot.slane %v215, %v252
  %v254 = vadd.f32 %v248, %v253
  %v255 = vadd.f32 %v249, %v253
  %v256 = vpack.c.bf16 %v255, %v254
  %v261 = vunpack.c.l.b16 %v179
  %v262 = vunpack.c.l.b16 %v180
  %v263 = vunpack.c.l.b16 %v181
  %v264 = vunpack.c.l.b16 %v182
  %v265 = vpack.c.b16 %v262, %v261
  %v266 = vpack.c.b16 %v264, %v263
  %v270 = vsel %vm216, %v256, 0
  %272 = vmatprep.subr.bf16.mxu0 0
  %273 = vmatpush1.bf16.msra.mxu0 %v265
  %274 = vmatprep.subr.bf16.mxu0 0
  %275 = vmatpush1.bf16.msra.mxu0 %v266
  %276 = vmatprep.subr.bf16.mxu0 0
  %277 = vmatpush1.bf16.msra.mxu0 0
  %278 = vmatprep.subr.bf16.mxu0 0
  %279 = vmatpush1.bf16.msra.mxu0 0
  %280 = vmatprep.subr.bf16.mxu0 0
  %281 = vmatpush1.bf16.msra.mxu0 0
  %282 = vmatprep.subr.bf16.mxu0 0
  %283 = vmatpush1.bf16.msra.mxu0 0
  %284 = vmatprep.subr.bf16.mxu0 0
  %285 = vmatpush1.bf16.msra.mxu0 0
  %286 = vmatprep.subr.bf16.mxu0 0
  %287 = vmatpush1.bf16.msra.mxu0 0
  %288 = vmatprep.subr.bf16.mxu0 0
  %289 = vmatpush1.bf16.msra.mxu0 0
  %290 = vmatprep.subr.bf16.mxu0 0
  %291 = vmatpush1.bf16.msra.mxu0 0
  %292 = vmatprep.subr.bf16.mxu0 0
  %293 = vmatpush1.bf16.msra.mxu0 0
  %294 = vmatprep.subr.bf16.mxu0 0
  %295 = vmatpush1.bf16.msra.mxu0 0
  %296 = vmatprep.subr.bf16.mxu0 0
  %297 = vmatpush1.bf16.msra.mxu0 0
  %298 = vmatprep.subr.bf16.mxu0 0
  %299 = vmatpush1.bf16.msra.mxu0 0
  %300 = vmatprep.subr.bf16.mxu0 0
  %301 = vmatpush1.bf16.msra.mxu0 0
  %302 = vmatprep.subr.bf16.mxu0 0
  %303 = vmatpush1.bf16.msra.mxu0 0
  %304 = vmatprep.mubr.bf16.mxu0 0
  %305 = vmatmul.mubr.bf16.gmra.mrb[0].mxu0 %v270
  %v306 = vpop.f32.mrb[0].mxu0
  %v307 = vadd.f32 0.0, %v306
  %v308 = vpop.f32.mrb[0].mxu0
  %v309 = vpop.f32.mrb[0].mxu0
  %v310 = vadd.f32 0.0, %v309
  %v311 = vpop.f32.mrb[0].mxu0
  %312 = vdwg.mxu0
  %v317 = vunpack.c.l.b16 %v183
  %v318 = vunpack.c.l.b16 %v184
  %v319 = vunpack.c.l.b16 %v185
  %v320 = vunpack.c.l.b16 %v186
  %v321 = vpack.c.b16 %v318, %v317
  %v322 = vpack.c.b16 %v320, %v319
  %325 = vmatprep.subr.bf16.mxu0 0
  %326 = vmatpush1.bf16.msra.mxu0 %v321
  %327 = vmatprep.subr.bf16.mxu0 0
  %328 = vmatpush1.bf16.msra.mxu0 %v322
  %329 = vmatprep.subr.bf16.mxu0 0
  %330 = vmatpush1.bf16.msra.mxu0 0
  %331 = vmatprep.subr.bf16.mxu0 0
  %332 = vmatpush1.bf16.msra.mxu0 0
  %333 = vmatprep.subr.bf16.mxu0 0
  %334 = vmatpush1.bf16.msra.mxu0 0
  %335 = vmatprep.subr.bf16.mxu0 0
  %336 = vmatpush1.bf16.msra.mxu0 0
  %337 = vmatprep.subr.bf16.mxu0 0
  %338 = vmatpush1.bf16.msra.mxu0 0
  %339 = vmatprep.subr.bf16.mxu0 0
  %340 = vmatpush1.bf16.msra.mxu0 0
  %341 = vmatprep.subr.bf16.mxu0 0
  %342 = vmatpush1.bf16.msra.mxu0 0
  %343 = vmatprep.subr.bf16.mxu0 0
  %344 = vmatpush1.bf16.msra.mxu0 0
  %345 = vmatprep.subr.bf16.mxu0 0
  %346 = vmatpush1.bf16.msra.mxu0 0
  %347 = vmatprep.subr.bf16.mxu0 0
  %348 = vmatpush1.bf16.msra.mxu0 0
  %349 = vmatprep.subr.bf16.mxu0 0
  %350 = vmatpush1.bf16.msra.mxu0 0
  %351 = vmatprep.subr.bf16.mxu0 0
  %352 = vmatpush1.bf16.msra.mxu0 0
  %353 = vmatprep.subr.bf16.mxu0 0
  %354 = vmatpush1.bf16.msra.mxu0 0
  %355 = vmatprep.subr.bf16.mxu0 0
  %356 = vmatpush1.bf16.msra.mxu0 0
  %357 = vmatprep.mubr.bf16.mxu0 0
  %358 = vmatmul.mubr.bf16.gmra.mrb[0].mxu0 %v270
  %v359 = vpop.f32.mrb[0].mxu0
  %v360 = vadd.f32 0.0, %v359
  %v361 = vpop.f32.mrb[0].mxu0
  %v362 = vpop.f32.mrb[0].mxu0
  %v363 = vadd.f32 0.0, %v362
  %v364 = vpop.f32.mrb[0].mxu0
  %365 = vdwg.mxu0
  %v370 = vunpack.c.l.b16 %v187
  %v371 = vunpack.c.l.b16 %v188
  %v372 = vunpack.c.l.b16 %v189
  %v373 = vunpack.c.l.b16 %v190
  %v374 = vpack.c.b16 %v371, %v370
  %v375 = vpack.c.b16 %v373, %v372
  %378 = vmatprep.subr.bf16.mxu0 0
  %379 = vmatpush1.bf16.msra.mxu0 %v374
  %380 = vmatprep.subr.bf16.mxu0 0
  %381 = vmatpush1.bf16.msra.mxu0 %v375
  %382 = vmatprep.subr.bf16.mxu0 0
  %383 = vmatpush1.bf16.msra.mxu0 0
  %384 = vmatprep.subr.bf16.mxu0 0
  %385 = vmatpush1.bf16.msra.mxu0 0
  %386 = vmatprep.subr.bf16.mxu0 0
  %387 = vmatpush1.bf16.msra.mxu0 0
  %388 = vmatprep.subr.bf16.mxu0 0
  %389 = vmatpush1.bf16.msra.mxu0 0
  %390 = vmatprep.subr.bf16.mxu0 0
  %391 = vmatpush1.bf16.msra.mxu0 0
  %392 = vmatprep.subr.bf16.mxu0 0
  %393 = vmatpush1.bf16.msra.mxu0 0
  %394 = vmatprep.subr.bf16.mxu0 0
  %395 = vmatpush1.bf16.msra.mxu0 0
  %396 = vmatprep.subr.bf16.mxu0 0
  %397 = vmatpush1.bf16.msra.mxu0 0
  %398 = vmatprep.subr.bf16.mxu0 0
  %399 = vmatpush1.bf16.msra.mxu0 0
  %400 = vmatprep.subr.bf16.mxu0 0
  %401 = vmatpush1.bf16.msra.mxu0 0
  %402 = vmatprep.subr.bf16.mxu0 0
  %403 = vmatpush1.bf16.msra.mxu0 0
  %404 = vmatprep.subr.bf16.mxu0 0
  %405 = vmatpush1.bf16.msra.mxu0 0
  %406 = vmatprep.subr.bf16.mxu0 0
  %407 = vmatpush1.bf16.msra.mxu0 0
  %408 = vmatprep.subr.bf16.mxu0 0
  %409 = vmatpush1.bf16.msra.mxu0 0
  %410 = vmatprep.mubr.bf16.mxu0 0
  %411 = vmatmul.mubr.bf16.gmra.mrb[0].mxu0 %v270
  %v412 = vpop.f32.mrb[0].mxu0
  %v413 = vadd.f32 0.0, %v412
  %v414 = vpop.f32.mrb[0].mxu0
  %v415 = vpop.f32.mrb[0].mxu0
  %v416 = vadd.f32 0.0, %v415
  %v417 = vpop.f32.mrb[0].mxu0
  %418 = vdwg.mxu0
  %v419 = vmul.f32 %v307, %v171
  %v420 = vmul.f32 %v310, %v172
  %v421 = vmul.f32 %v307, %v173
  %v422 = vmul.f32 %v310, %v174
  %v423 = vmul.f32 %v307, %v175
  %v424 = vmul.f32 %v310, %v176
  %v425 = vmul.f32 %v307, %v177
  %v426 = vmul.f32 %v310, %v178
  %v427 = vpack.c.bf16 %v420, %v419
  %v428 = vpack.c.bf16 %v422, %v421
  %v429 = vpack.c.bf16 %v424, %v423
  %v430 = vpack.c.bf16 %v426, %v425
  %v431 = vpack.c.bf16 %v363, %v360
  %v433 = vsel %vm216, %v427, 0
  %v436 = vsel %vm216, %v428, 0
  %v439 = vsel %vm216, %v429, 0
  %v442 = vsel %vm216, %v430, 0
  %v445 = vsel %vm216, %v431, 0
  %447 = vmatprep.subr.bf16.mxu0 0
  %448 = vmatpush1.bf16.xpose.msra.mxu0 %v445
  %449 = vmatprep.subr.bf16.mxu0 0
  %450 = vmatpush1.bf16.xpose.msra.mxu0 0
  %451 = vmatprep.subr.bf16.mxu0 0
  %452 = vmatpush1.bf16.xpose.msra.mxu0 0
  %453 = vmatprep.subr.bf16.mxu0 0
  %454 = vmatpush1.bf16.xpose.msra.mxu0 0
  %455 = vmatprep.subr.bf16.mxu0 0
  %456 = vmatpush1.bf16.xpose.msra.mxu0 0
  %457 = vmatprep.subr.bf16.mxu0 0
  %458 = vmatpush1.bf16.xpose.msra.mxu0 0
  %459 = vmatprep.subr.bf16.mxu0 0
  %460 = vmatpush1.bf16.xpose.msra.mxu0 0
  %461 = vmatprep.subr.bf16.mxu0 0
  %462 = vmatpush1.bf16.xpose.msra.mxu0 0
  %463 = vmatprep.subr.bf16.mxu0 0
  %464 = vmatpush1.bf16.xpose.msra.mxu0 0
  %465 = vmatprep.subr.bf16.mxu0 0
  %466 = vmatpush1.bf16.xpose.msra.mxu0 0
  %467 = vmatprep.subr.bf16.mxu0 0
  %468 = vmatpush1.bf16.xpose.msra.mxu0 0
  %469 = vmatprep.subr.bf16.mxu0 0
  %470 = vmatpush1.bf16.xpose.msra.mxu0 0
  %471 = vmatprep.subr.bf16.mxu0 0
  %472 = vmatpush1.bf16.xpose.msra.mxu0 0
  %473 = vmatprep.subr.bf16.mxu0 0
  %474 = vmatpush1.bf16.xpose.msra.mxu0 0
  %475 = vmatprep.subr.bf16.mxu0 0
  %476 = vmatpush1.bf16.xpose.msra.mxu0 0
  %477 = vmatprep.subr.bf16.mxu0 0
  %478 = vmatpush1.bf16.xpose.msra.mxu0 0
  %479 = vmatprep.mubr.bf16.mxu0 0
  %480 = vmatmul.mubr.bf16.gmra.mrb[0].mxu0 %v433
  %v481 = vpop.f32.mrb[0].mxu0
  %v482 = vadd.f32 %v147, %v481
  %v483 = vpop.f32.mrb[0].mxu0
  %v484 = vpop.f32.mrb[0].mxu0
  %v485 = vadd.f32 %v148, %v484
  %v486 = vpop.f32.mrb[0].mxu0
  %487 = vmatprep.mubr.bf16.mxu0 0
  %488 = vmatmul.mubr.bf16.gmra.mrb[0].mxu0 %v436
  %v489 = vpop.f32.mrb[0].mxu0
  %v490 = vadd.f32 %v147, %v489
  %v491 = vpop.f32.mrb[0].mxu0
  %v492 = vpop.f32.mrb[0].mxu0
  %v493 = vadd.f32 %v148, %v492
  %v494 = vpop.f32.mrb[0].mxu0
  %495 = vmatprep.mubr.bf16.mxu0 0
  %496 = vmatmul.mubr.bf16.gmra.mrb[0].mxu0 %v439
  %v497 = vpop.f32.mrb[0].mxu0
  %v498 = vadd.f32 %v147, %v497
  %v499 = vpop.f32.mrb[0].mxu0
  %v500 = vpop.f32.mrb[0].mxu0
  %v501 = vadd.f32 %v148, %v500
  %v502 = vpop.f32.mrb[0].mxu0
  %503 = vmatprep.mubr.bf16.mxu0 0
  %504 = vmatmul.mubr.bf16.gmra.mrb[0].mxu0 %v442
  %v505 = vpop.f32.mrb[0].mxu0
  %v506 = vadd.f32 %v147, %v505
  %v507 = vpop.f32.mrb[0].mxu0
  %v508 = vpop.f32.mrb[0].mxu0
  %v509 = vadd.f32 %v148, %v508
  %v510 = vpop.f32.mrb[0].mxu0
  %511 = vdwg.mxu0
  %vm512 = vcmask 130048
  %v513 = vsel %vm512, %v482, -inf
  %514 = vmax.xlane.f32.xlu0 %v513
  %v515 = vpop.xlane.xlu0 %514
  %v516 = vsel %vm512, %v485, -inf
  %517 = vmax.xlane.f32.xlu0 %v516
  %v518 = vpop.xlane.xlu0 %517
  %v519 = vsel %vm512, %v490, -inf
  %520 = vmax.xlane.f32.xlu0 %v519
  %v521 = vpop.xlane.xlu0 %520
  %v522 = vsel %vm512, %v493, -inf
  %523 = vmax.xlane.f32.xlu0 %v522
  %v524 = vpop.xlane.xlu0 %523
  %v525 = vsel %vm512, %v498, -inf
  %526 = vmax.xlane.f32.xlu0 %v525
  %v527 = vpop.xlane.xlu0 %526
  %v528 = vsel %vm512, %v501, -inf
  %529 = vmax.xlane.f32.xlu0 %v528
  %v530 = vpop.xlane.xlu0 %529
  %v531 = vsel %vm512, %v506, -inf
  %532 = vmax.xlane.f32.xlu0 %v531
  %v533 = vpop.xlane.xlu0 %532
  %v534 = vsel %vm512, %v509, -inf
  %535 = vmax.xlane.f32.xlu0 %v534
  %v536 = vpop.xlane.xlu0 %535
  %v537 = vsub.f32 %v482, %v515
  %v538 = vsub.f32 %v485, %v518
  %v539 = vsub.f32 %v490, %v521
  %v540 = vsub.f32 %v493, %v524
  %v541 = vsub.f32 %v498, %v527
  %v542 = vsub.f32 %v501, %v530
  %v543 = vsub.f32 %v506, %v533
  %v544 = vsub.f32 %v509, %v536
  %v545 = vmul.f32 %v537, 1.442695
  %v546 = vpow.pop %v545
  %v547 = vmul.f32 %v538, 1.442695
  %v548 = vpow.pop %v547
  %v549 = vmul.f32 %v539, 1.442695
  %v550 = vpow.pop %v549
  %v551 = vmul.f32 %v540, 1.442695
  %v552 = vpow.pop %v551
  %v553 = vmul.f32 %v541, 1.442695
  %v554 = vpow.pop %v553
  %v555 = vmul.f32 %v542, 1.442695
  %v556 = vpow.pop %v555
  %v557 = vmul.f32 %v543, 1.442695
  %v558 = vpow.pop %v557
  %v559 = vmul.f32 %v544, 1.442695
  %v560 = vpow.pop %v559
  %v561 = vsel %vm512, %v546, 0.0
  %562 = vadd.xlane.f32.xlu0 %v561
  %v563 = vpop.xlane.xlu0 %562
  %v564 = vsel %vm512, %v548, 0.0
  %565 = vadd.xlane.f32.xlu0 %v564
  %v566 = vpop.xlane.xlu0 %565
  %v567 = vsel %vm512, %v550, 0.0
  %568 = vadd.xlane.f32.xlu0 %v567
  %v569 = vpop.xlane.xlu0 %568
  %v570 = vsel %vm512, %v552, 0.0
  %571 = vadd.xlane.f32.xlu0 %v570
  %v572 = vpop.xlane.xlu0 %571
  %v573 = vsel %vm512, %v554, 0.0
  %574 = vadd.xlane.f32.xlu0 %v573
  %v575 = vpop.xlane.xlu0 %574
  %v576 = vsel %vm512, %v556, 0.0
  %577 = vadd.xlane.f32.xlu0 %v576
  %v578 = vpop.xlane.xlu0 %577
  %v579 = vsel %vm512, %v558, 0.0
  %580 = vadd.xlane.f32.xlu0 %v579
  %v581 = vpop.xlane.xlu0 %580
  %v582 = vsel %vm512, %v560, 0.0
  %583 = vadd.xlane.f32.xlu0 %v582
  %v584 = vpop.xlane.xlu0 %583
  %v585 = vrcp.pop %v563
  %v586 = vrcp.pop %v566
  %v587 = vrcp.pop %v569
  %v588 = vrcp.pop %v572
  %v589 = vrcp.pop %v575
  %v590 = vrcp.pop %v578
  %v591 = vrcp.pop %v581
  %v592 = vrcp.pop %v584
  %v593 = vmul.f32 %v546, %v585
  %v594 = vmul.f32 %v548, %v586
  %v595 = vmul.f32 %v550, %v587
  %v596 = vmul.f32 %v552, %v588
  %v597 = vmul.f32 %v554, %v589
  %v598 = vmul.f32 %v556, %v590
  %v599 = vmul.f32 %v558, %v591
  %v600 = vmul.f32 %v560, %v592
  %v601 = vpack.c.bf16 %v594, %v593
  %v602 = vpack.c.bf16 %v596, %v595
  %v603 = vpack.c.bf16 %v598, %v597
  %v604 = vpack.c.bf16 %v600, %v599
  %v605 = vpack.c.bf16 %v416, %v413
  %v607 = vsel %vm512, %v601, 0
  %v610 = vsel %vm512, %v602, 0
  %v613 = vsel %vm512, %v603, 0
  %v616 = vsel %vm512, %v604, 0
  %618 = vmatprep.subr.bf16.mxu0 0
  %619 = vmatpush1.bf16.msra.mxu0 %v605
  %620 = vmatprep.subr.bf16.mxu0 0
  %621 = vmatpush1.bf16.msra.mxu0 0
  %622 = vmatprep.subr.bf16.mxu0 0
  %623 = vmatpush1.bf16.msra.mxu0 0
  %624 = vmatprep.subr.bf16.mxu0 0
  %625 = vmatpush1.bf16.msra.mxu0 0
  %626 = vmatprep.subr.bf16.mxu0 0
  %627 = vmatpush1.bf16.msra.mxu0 0
  %628 = vmatprep.subr.bf16.mxu0 0
  %629 = vmatpush1.bf16.msra.mxu0 0
  %630 = vmatprep.subr.bf16.mxu0 0
  %631 = vmatpush1.bf16.msra.mxu0 0
  %632 = vmatprep.subr.bf16.mxu0 0
  %633 = vmatpush1.bf16.msra.mxu0 0
  %634 = vmatprep.subr.bf16.mxu0 0
  %635 = vmatpush1.bf16.msra.mxu0 0
  %636 = vmatprep.subr.bf16.mxu0 0
  %637 = vmatpush1.bf16.msra.mxu0 0
  %638 = vmatprep.subr.bf16.mxu0 0
  %639 = vmatpush1.bf16.msra.mxu0 0
  %640 = vmatprep.subr.bf16.mxu0 0
  %641 = vmatpush1.bf16.msra.mxu0 0
  %642 = vmatprep.subr.bf16.mxu0 0
  %643 = vmatpush1.bf16.msra.mxu0 0
  %644 = vmatprep.subr.bf16.mxu0 0
  %645 = vmatpush1.bf16.msra.mxu0 0
  %646 = vmatprep.subr.bf16.mxu0 0
  %647 = vmatpush1.bf16.msra.mxu0 0
  %648 = vmatprep.subr.bf16.mxu0 0
  %649 = vmatpush1.bf16.msra.mxu0 0
  %650 = vmatprep.mubr.bf16.mxu0 0
  %651 = vmatmul.mubr.bf16.gmra.mrb[0].mxu0 %v607
  %v652 = vpop.f32.mrb[0].mxu0
  %v653 = vadd.f32 0.0, %v652
  %v654 = vpop.f32.mrb[0].mxu0
  %v655 = vpop.f32.mrb[0].mxu0
  %v656 = vadd.f32 0.0, %v655
  %v657 = vpop.f32.mrb[0].mxu0
  %658 = vmatprep.mubr.bf16.mxu0 0
  %659 = vmatmul.mubr.bf16.gmra.mrb[0].mxu0 %v610
  %v660 = vpop.f32.mrb[0].mxu0
  %v661 = vadd.f32 0.0, %v660
  %v662 = vpop.f32.mrb[0].mxu0
  %v663 = vpop.f32.mrb[0].mxu0
  %v664 = vadd.f32 0.0, %v663
  %v665 = vpop.f32.mrb[0].mxu0
  %666 = vmatprep.mubr.bf16.mxu0 0
  %667 = vmatmul.mubr.bf16.gmra.mrb[0].mxu0 %v613
  %v668 = vpop.f32.mrb[0].mxu0
  %v669 = vadd.f32 0.0, %v668
  %v670 = vpop.f32.mrb[0].mxu0
  %v671 = vpop.f32.mrb[0].mxu0
  %v672 = vadd.f32 0.0, %v671
  %v673 = vpop.f32.mrb[0].mxu0
  %674 = vmatprep.mubr.bf16.mxu0 0
  %675 = vmatmul.mubr.bf16.gmra.mrb[0].mxu0 %v616
  %v676 = vpop.f32.mrb[0].mxu0
  %v677 = vadd.f32 0.0, %v676
  %v678 = vpop.f32.mrb[0].mxu0
  %v679 = vpop.f32.mrb[0].mxu0
  %v680 = vadd.f32 0.0, %v679
  %v681 = vpop.f32.mrb[0].mxu0
  %682 = vdwg.mxu0
  %v683 = vmul.f32 %v653, %v171
  %v684 = vmul.f32 %v656, %v172
  %v685 = vmul.f32 %v661, %v173
  %v686 = vmul.f32 %v664, %v174
  %v687 = vmul.f32 %v669, %v175
  %v688 = vmul.f32 %v672, %v176
  %v689 = vmul.f32 %v677, %v177
  %v690 = vmul.f32 %v680, %v178
  %v691 = vadd.f32 %v683, %v685
  %v692 = vadd.f32 %v684, %v686
  %v693 = vadd.f32 %v691, %v687
  %v694 = vadd.f32 %v692, %v688
  %v695 = vadd.f32 %v693, %v689
  %v696 = vadd.f32 %v694, %v690
  %v697 = vpack.c.bf16 %v696, %v695
  %v698 = vlaneseq
  %v699 = vshrl.u32 %v698, 7
  %v700 = vsub.s32 4, %v699
  %v701 = vrot.slane %v215, %v700
  %v706 = vunpack.c.l.b16 %v191
  %v707 = vunpack.c.l.b16 %v192
  %v708 = vunpack.c.l.b16 %v193
  %v709 = vunpack.c.l.b16 %v194
  %v710 = vpack.c.b16 %v707, %v706
  %v711 = vpack.c.b16 %v709, %v708
  %v715 = vsel %vm216, %v697, 0
  %717 = vmatprep.subr.bf16.mxu0 0
  %718 = vmatpush1.bf16.msra.mxu0 %v710
  %719 = vmatprep.subr.bf16.mxu0 0
  %720 = vmatpush1.bf16.msra.mxu0 %v711
  %721 = vmatprep.subr.bf16.mxu0 0
  %722 = vmatpush1.bf16.msra.mxu0 0
  %723 = vmatprep.subr.bf16.mxu0 0
  %724 = vmatpush1.bf16.msra.mxu0 0
  %725 = vmatprep.subr.bf16.mxu0 0
  %726 = vmatpush1.bf16.msra.mxu0 0
  %727 = vmatprep.subr.bf16.mxu0 0
  %728 = vmatpush1.bf16.msra.mxu0 0
  %729 = vmatprep.subr.bf16.mxu0 0
  %730 = vmatpush1.bf16.msra.mxu0 0
  %731 = vmatprep.subr.bf16.mxu0 0
  %732 = vmatpush1.bf16.msra.mxu0 0
  %733 = vmatprep.subr.bf16.mxu0 0
  %734 = vmatpush1.bf16.msra.mxu0 0
  %735 = vmatprep.subr.bf16.mxu0 0
  %736 = vmatpush1.bf16.msra.mxu0 0
  %737 = vmatprep.subr.bf16.mxu0 0
  %738 = vmatpush1.bf16.msra.mxu0 0
  %739 = vmatprep.subr.bf16.mxu0 0
  %740 = vmatpush1.bf16.msra.mxu0 0
  %741 = vmatprep.subr.bf16.mxu0 0
  %742 = vmatpush1.bf16.msra.mxu0 0
  %743 = vmatprep.subr.bf16.mxu0 0
  %744 = vmatpush1.bf16.msra.mxu0 0
  %745 = vmatprep.subr.bf16.mxu0 0
  %746 = vmatpush1.bf16.msra.mxu0 0
  %747 = vmatprep.subr.bf16.mxu0 0
  %748 = vmatpush1.bf16.msra.mxu0 0
  %749 = vmatprep.mubr.bf16.mxu0 0
  %750 = vmatmul.mubr.bf16.gmra.mrb[0].mxu0 %v715
  %v751 = vpop.f32.mrb[0].mxu0
  %v752 = vadd.f32 %v701, %v751
  %v753 = vpop.f32.mrb[0].mxu0
  %v754 = vpop.f32.mrb[0].mxu0
  %v755 = vadd.f32 %v701, %v754
  %v756 = vpop.f32.mrb[0].mxu0
  %757 = vdwg.mxu0
  %v758 = vadd.f32 %v131, %v752
  %v759 = vadd.f32 %v134, %v755
  %v760 = vsel %vm216, %v758, 0.0
  %761 = vadd.xlane.f32.xlu0 %v760
  %v762 = vpop.xlane.xlu0 %761
  %v763 = vsel %vm216, %v759, 0.0
  %764 = vadd.xlane.f32.xlu0 %v763
  %v765 = vpop.xlane.xlu0 %764
  %v766 = vmul.f32 %v762, %v223
  %v767 = vmul.f32 %v765, %v223
  %v768 = vsub.f32 %v758, %v766
  %v769 = vsub.f32 %v759, %v767
  %v770 = vmul.f32 %v768, %v768
  %v771 = vmul.f32 %v769, %v769
  %v772 = vsel %vm216, %v770, 0.0
  %773 = vadd.xlane.f32.xlu0 %v772
  %v774 = vpop.xlane.xlu0 %773
  %v775 = vsel %vm216, %v771, 0.0
  %776 = vadd.xlane.f32.xlu0 %v775
  %v777 = vpop.xlane.xlu0 %776
  %v778 = vmul.f32 %v774, %v223
  %v779 = vmul.f32 %v777, %v223
  %v780 = vadd.f32 %v778, 1e-05
  %v781 = vadd.f32 %v779, 1e-05
  %v782 = vrsqrt.pop %v780
  %v783 = vrsqrt.pop %v781
  %v784 = vmul.f32 %v768, %v782
  %v785 = vmul.f32 %v769, %v783
  %v786 = vlaneseq
  %v787 = vshrl.u32 %v786, 7
  %v788 = vsub.s32 2, %v787
  %v789 = vrot.slane %v215, %v788
  %v790 = vmul.f32 %v784, %v789
  %v791 = vmul.f32 %v785, %v789
  %v792 = vlaneseq
  %v793 = vshrl.u32 %v792, 7
  %v794 = vsub.s32 3, %v793
  %v795 = vrot.slane %v215, %v794
  %v796 = vadd.f32 %v790, %v795
  %v797 = vadd.f32 %v791, %v795
  %v798 = vpack.c.bf16 %v797, %v796
  %v799 = vlaneseq
  %v800 = vshrl.u32 %v799, 7
  %v801 = vsub.s32 6, %v800
  %v802 = vrot.slane %v215, %v801
  %v807 = vunpack.c.l.b16 %v211
  %v808 = vunpack.c.l.b16 %v212
  %v809 = vunpack.c.l.b16 %v213
  %v810 = vunpack.c.l.b16 %v214
  %v811 = vpack.c.b16 %v808, %v807
  %v812 = vpack.c.b16 %v810, %v809
  %v816 = vsel %vm216, %v798, 0
  %818 = vmatprep.subr.bf16.mxu0 0
  %819 = vmatpush1.bf16.msra.mxu0 %v811
  %820 = vmatprep.subr.bf16.mxu0 0
  %821 = vmatpush1.bf16.msra.mxu0 %v812
  %822 = vmatprep.subr.bf16.mxu0 0
  %823 = vmatpush1.bf16.msra.mxu0 0
  %824 = vmatprep.subr.bf16.mxu0 0
  %825 = vmatpush1.bf16.msra.mxu0 0
  %826 = vmatprep.subr.bf16.mxu0 0
  %827 = vmatpush1.bf16.msra.mxu0 0
  %828 = vmatprep.subr.bf16.mxu0 0
  %829 = vmatpush1.bf16.msra.mxu0 0
  %830 = vmatprep.subr.bf16.mxu0 0
  %831 = vmatpush1.bf16.msra.mxu0 0
  %832 = vmatprep.subr.bf16.mxu0 0
  %833 = vmatpush1.bf16.msra.mxu0 0
  %834 = vmatprep.subr.bf16.mxu0 0
  %835 = vmatpush1.bf16.msra.mxu0 0
  %836 = vmatprep.subr.bf16.mxu0 0
  %837 = vmatpush1.bf16.msra.mxu0 0
  %838 = vmatprep.subr.bf16.mxu0 0
  %839 = vmatpush1.bf16.msra.mxu0 0
  %840 = vmatprep.subr.bf16.mxu0 0
  %841 = vmatpush1.bf16.msra.mxu0 0
  %842 = vmatprep.subr.bf16.mxu0 0
  %843 = vmatpush1.bf16.msra.mxu0 0
  %844 = vmatprep.subr.bf16.mxu0 0
  %845 = vmatpush1.bf16.msra.mxu0 0
  %846 = vmatprep.subr.bf16.mxu0 0
  %847 = vmatpush1.bf16.msra.mxu0 0
  %848 = vmatprep.subr.bf16.mxu0 0
  %849 = vmatpush1.bf16.msra.mxu0 0
  %850 = vmatprep.mubr.bf16.mxu0 0
  %851 = vmatmul.mubr.bf16.gmra.mrb[0].mxu0 %v816
  %v852 = vpop.f32.mrb[0].mxu0
  %v853 = vadd.f32 %v802, %v852
  %v854 = vpop.f32.mrb[0].mxu0
  %v855 = vpop.f32.mrb[0].mxu0
  %v856 = vadd.f32 %v802, %v855
  %v857 = vpop.f32.mrb[0].mxu0
  %858 = vdwg.mxu0
  %v859 = vmax.f32 %v853, 0.0
  %v860 = vmax.f32 %v856, 0.0
  %v861 = vpack.c.bf16 %v860, %v859
  %v862 = vlaneseq
  %v863 = vshrl.u32 %v862, 7
  %v864 = vsub.s32 5, %v863
  %v865 = vrot.slane %v215, %v864
  %v882 = vunpack.c.l.b16 %v195
  %v883 = vunpack.c.l.b16 %v196
  %v884 = vunpack.c.l.b16 %v197
  %v885 = vunpack.c.l.b16 %v198
  %v886 = vunpack.c.l.b16 %v199
  %v887 = vunpack.c.l.b16 %v200
  %v888 = vunpack.c.l.b16 %v201
  %v889 = vunpack.c.l.b16 %v202
  %v890 = vunpack.c.l.b16 %v203
  %v891 = vunpack.c.l.b16 %v204
  %v892 = vunpack.c.l.b16 %v205
  %v893 = vunpack.c.l.b16 %v206
  %v894 = vunpack.c.l.b16 %v207
  %v895 = vunpack.c.l.b16 %v208
  %v896 = vunpack.c.l.b16 %v209
  %v897 = vunpack.c.l.b16 %v210
  %v898 = vpack.c.b16 %v883, %v882
  %v899 = vpack.c.b16 %v885, %v884
  %v900 = vpack.c.b16 %v887, %v886
  %v901 = vpack.c.b16 %v889, %v888
  %v902 = vpack.c.b16 %v891, %v890
  %v903 = vpack.c.b16 %v893, %v892
  %v904 = vpack.c.b16 %v895, %v894
  %v905 = vpack.c.b16 %v897, %v896
  %914 = vmatprep.subr.bf16.mxu0 0
  %915 = vmatpush1.bf16.msra.mxu0 %v898
  %916 = vmatprep.subr.bf16.mxu0 0
  %917 = vmatpush1.bf16.msra.mxu0 %v899
  %918 = vmatprep.subr.bf16.mxu0 0
  %919 = vmatpush1.bf16.msra.mxu0 %v900
  %920 = vmatprep.subr.bf16.mxu0 0
  %921 = vmatpush1.bf16.msra.mxu0 %v901
  %922 = vmatprep.subr.bf16.mxu0 0
  %923 = vmatpush1.bf16.msra.mxu0 %v902
  %924 = vmatprep.subr.bf16.mxu0 0
  %925 = vmatpush1.bf16.msra.mxu0 %v903
  %926 = vmatprep.subr.bf16.mxu0 0
  %927 = vmatpush1.bf16.msra.mxu0 %v904
  %928 = vmatprep.subr.bf16.mxu0 0
  %929 = vmatpush1.bf16.msra.mxu0 %v905
  %930 = vmatprep.subr.bf16.mxu0 0
  %931 = vmatpush1.bf16.msra.mxu0 0
  %932 = vmatprep.subr.bf16.mxu0 0
  %933 = vmatpush1.bf16.msra.mxu0 0
  %934 = vmatprep.subr.bf16.mxu0 0
  %935 = vmatpush1.bf16.msra.mxu0 0
  %936 = vmatprep.subr.bf16.mxu0 0
  %937 = vmatpush1.bf16.msra.mxu0 0
  %938 = vmatprep.subr.bf16.mxu0 0
  %939 = vmatpush1.bf16.msra.mxu0 0
  %940 = vmatprep.subr.bf16.mxu0 0
  %941 = vmatpush1.bf16.msra.mxu0 0
  %942 = vmatprep.subr.bf16.mxu0 0
  %943 = vmatpush1.bf16.msra.mxu0 0
  %944 = vmatprep.subr.bf16.mxu0 0
  %945 = vmatpush1.bf16.msra.mxu0 0
  %946 = vmatprep.mubr.bf16.mxu0 0
  %947 = vmatmul.mubr.bf16.gmra.mrb[0].mxu0 %v861
  %v948 = vpop.f32.mrb[0].mxu0
  %v949 = vadd.f32 %v865, %v948
  %v950 = vpop.f32.mrb[0].mxu0
  %v951 = vpop.f32.mrb[0].mxu0
  %v952 = vadd.f32 %v865, %v951
  %v953 = vpop.f32.mrb[0].mxu0
  %954 = vdwg.mxu0
  %v955 = vadd.f32 %v758, %v949
  %v956 = vadd.f32 %v759, %v952
  %v957 = vld [vmem:[%s1 + $0xb0] sm:$0xf]
  %v958 = vld [vmem:[%s1 + $0xb4] sm:$0xf]
  %v959 = vld [vmem:[%s1 + $0xb8] sm:$0xf]
  %v960 = vld [vmem:[%s1 + $0xbc] sm:$0xf]
  %v961 = vld [vmem:[%s1 + $0xc0] sm:$0xf]
  %v962 = vld [vmem:[%s1 + $0xc4] sm:$0xf]
  %v963 = vld [vmem:[%s1 + $0xc8] sm:$0xf]
  %v964 = vld [vmem:[%s1 + $0xcc] sm:$0xf]
  %v965 = vld [vmem:[%s1 + $0xd0] sm:$0xf]
  %v966 = vld [vmem:[%s1 + $0xd4] sm:$0xf]
  %v967 = vld [vmem:[%s1 + $0xd8] sm:$0xf]
  %v968 = vld [vmem:[%s1 + $0xdc] sm:$0xf]
  %v969 = vld [vmem:[%s1 + $0xe0] sm:$0xf]
  %v970 = vld [vmem:[%s1 + $0xe4] sm:$0xf]
  %v971 = vld [vmem:[%s1 + $0xe8] sm:$0xf]
  %v972 = vld [vmem:[%s1 + $0xec] sm:$0xf]
  %v973 = vld [vmem:[%s1 + $0xf0] sm:$0xf]
  %v974 = vld [vmem:[%s1 + $0xf4] sm:$0xf]
  %v975 = vld [vmem:[%s1 + $0xf8] sm:$0xf]
  %v976 = vld [vmem:[%s1 + $0xfc] sm:$0xf]
  %v977 = vld [vmem:[%s1 + $0x100] sm:$0xf]
  %v978 = vld [vmem:[%s1 + $0x104] sm:$0xf]
  %v979 = vld [vmem:[%s1 + $0x108] sm:$0xf]
  %v980 = vld [vmem:[%s1 + $0x10c] sm:$0xf]
  %v981 = vld [vmem:[%s1 + $0x110] sm:$0xf]
  %v982 = vld [vmem:[%s1 + $0x114] sm:$0xf]
  %v983 = vld [vmem:[%s1 + $0x118] sm:$0xf]
  %v984 = vld [vmem:[%s1 + $0x11c] sm:$0xf]
  %v985 = vld [vmem:[%s1 + $0x120] sm:$0xf]
  %v986 = vld [vmem:[%s1 + $0x124] sm:$0xf]
  %v987 = vld [vmem:[%s1 + $0x128] sm:$0xf]
  %v988 = vld [vmem:[%s1 + $0x12c] sm:$0xf]
  %s989 = scalar_lea.vmem %s2, 16
  %v990 = vld [vmem:[%s989] sm:$0xf]
  %v991 = vld [vmem:[%s989 + $0x4] sm:$0xf]
  %v992 = vld [vmem:[%s989 + $0x8] sm:$0xf]
  %v993 = vld [vmem:[%s989 + $0xc] sm:$0xf]
  %s994 = scalar_lea.vmem %s3, 8
  %v995 = vld [vmem:[%s994] sm:$0xff]
  %v996 = vsel %vm216, %v955, 0.0
  %997 = vadd.xlane.f32.xlu0 %v996
  %v998 = vpop.xlane.xlu0 %997
  %v999 = vsel %vm216, %v956, 0.0
  %1000 = vadd.xlane.f32.xlu0 %v999
  %v1001 = vpop.xlane.xlu0 %1000
  %v1002 = vmul.f32 %v998, %v223
  %v1003 = vmul.f32 %v1001, %v223
  %v1004 = vsub.f32 %v955, %v1002
  %v1005 = vsub.f32 %v956, %v1003
  %v1006 = vmul.f32 %v1004, %v1004
  %v1007 = vmul.f32 %v1005, %v1005
  %v1008 = vsel %vm216, %v1006, 0.0
  %1009 = vadd.xlane.f32.xlu0 %v1008
  %v1010 = vpop.xlane.xlu0 %1009
  %v1011 = vsel %vm216, %v1007, 0.0
  %1012 = vadd.xlane.f32.xlu0 %v1011
  %v1013 = vpop.xlane.xlu0 %1012
  %v1014 = vmul.f32 %v1010, %v223
  %v1015 = vmul.f32 %v1013, %v223
  %v1016 = vadd.f32 %v1014, 1e-05
  %v1017 = vadd.f32 %v1015, 1e-05
  %v1018 = vrsqrt.pop %v1016
  %v1019 = vrsqrt.pop %v1017
  %v1020 = vmul.f32 %v1004, %v1018
  %v1021 = vmul.f32 %v1005, %v1019
  %v1022 = vlaneseq
  %v1023 = vshrl.u32 %v1022, 7
  %v1024 = vsub.s32 0, %v1023
  %v1025 = vrot.slane %v995, %v1024
  %v1026 = vmul.f32 %v1020, %v1025
  %v1027 = vmul.f32 %v1021, %v1025
  %v1028 = vlaneseq
  %v1029 = vshrl.u32 %v1028, 7
  %v1030 = vsub.s32 1, %v1029
  %v1031 = vrot.slane %v995, %v1030
  %v1032 = vadd.f32 %v1026, %v1031
  %v1033 = vadd.f32 %v1027, %v1031
  %v1034 = vpack.c.bf16 %v1033, %v1032
  %v1039 = vunpack.c.l.b16 %v957
  %v1040 = vunpack.c.l.b16 %v958
  %v1041 = vunpack.c.l.b16 %v959
  %v1042 = vunpack.c.l.b16 %v960
  %v1043 = vpack.c.b16 %v1040, %v1039
  %v1044 = vpack.c.b16 %v1042, %v1041
  %v1048 = vsel %vm216, %v1034, 0
  %1050 = vmatprep.subr.bf16.mxu0 0
  %1051 = vmatpush1.bf16.msra.mxu0 %v1043
  %1052 = vmatprep.subr.bf16.mxu0 0
  %1053 = vmatpush1.bf16.msra.mxu0 %v1044
  %1054 = vmatprep.subr.bf16.mxu0 0
  %1055 = vmatpush1.bf16.msra.mxu0 0
  %1056 = vmatprep.subr.bf16.mxu0 0
  %1057 = vmatpush1.bf16.msra.mxu0 0
  %1058 = vmatprep.subr.bf16.mxu0 0
  %1059 = vmatpush1.bf16.msra.mxu0 0
  %1060 = vmatprep.subr.bf16.mxu0 0
  %1061 = vmatpush1.bf16.msra.mxu0 0
  %1062 = vmatprep.subr.bf16.mxu0 0
  %1063 = vmatpush1.bf16.msra.mxu0 0
  %1064 = vmatprep.subr.bf16.mxu0 0
  %1065 = vmatpush1.bf16.msra.mxu0 0
  %1066 = vmatprep.subr.bf16.mxu0 0
  %1067 = vmatpush1.bf16.msra.mxu0 0
  %1068 = vmatprep.subr.bf16.mxu0 0
  %1069 = vmatpush1.bf16.msra.mxu0 0
  %1070 = vmatprep.subr.bf16.mxu0 0
  %1071 = vmatpush1.bf16.msra.mxu0 0
  %1072 = vmatprep.subr.bf16.mxu0 0
  %1073 = vmatpush1.bf16.msra.mxu0 0
  %1074 = vmatprep.subr.bf16.mxu0 0
  %1075 = vmatpush1.bf16.msra.mxu0 0
  %1076 = vmatprep.subr.bf16.mxu0 0
  %1077 = vmatpush1.bf16.msra.mxu0 0
  %1078 = vmatprep.subr.bf16.mxu0 0
  %1079 = vmatpush1.bf16.msra.mxu0 0
  %1080 = vmatprep.subr.bf16.mxu0 0
  %1081 = vmatpush1.bf16.msra.mxu0 0
  %1082 = vmatprep.mubr.bf16.mxu0 0
  %1083 = vmatmul.mubr.bf16.gmra.mrb[0].mxu0 %v1048
  %v1084 = vpop.f32.mrb[0].mxu0
  %v1085 = vadd.f32 0.0, %v1084
  %v1086 = vpop.f32.mrb[0].mxu0
  %v1087 = vpop.f32.mrb[0].mxu0
  %v1088 = vadd.f32 0.0, %v1087
  %v1089 = vpop.f32.mrb[0].mxu0
  %1090 = vdwg.mxu0
  %v1095 = vunpack.c.l.b16 %v961
  %v1096 = vunpack.c.l.b16 %v962
  %v1097 = vunpack.c.l.b16 %v963
  %v1098 = vunpack.c.l.b16 %v964
  %v1099 = vpack.c.b16 %v1096, %v1095
  %v1100 = vpack.c.b16 %v1098, %v1097
  %1103 = vmatprep.subr.bf16.mxu0 0
  %1104 = vmatpush1.bf16.msra.mxu0 %v1099
  %1105 = vmatprep.subr.bf16.mxu0 0
  %1106 = vmatpush1.bf16.msra.mxu0 %v1100
  %1107 = vmatprep.subr.bf16.mxu0 0
  %1108 = vmatpush1.bf16.msra.mxu0 0
  %1109 = vmatprep.subr.bf16.mxu0 0
  %1110 = vmatpush1.bf16.msra.mxu0 0
  %1111 = vmatprep.subr.bf16.mxu0 0
  %1112 = vmatpush1.bf16.msra.mxu0 0
  %1113 = vmatprep.subr.bf16.mxu0 0
  %1114 = vmatpush1.bf16.msra.mxu0 0
  %1115 = vmatprep.subr.bf16.mxu0 0
  %1116 = vmatpush1.bf16.msra.mxu0 0
  %1117 = vmatprep.subr.bf16.mxu0 0
  %1118 = vmatpush1.bf16.msra.mxu0 0
  %1119 = vmatprep.subr.bf16.mxu0 0
  %1120 = vmatpush1.bf16.msra.mxu0 0
  %1121 = vmatprep.subr.bf16.mxu0 0
  %1122 = vmatpush1.bf16.msra.mxu0 0
  %1123 = vmatprep.subr.bf16.mxu0 0
  %1124 = vmatpush1.bf16.msra.mxu0 0
  %1125 = vmatprep.subr.bf16.mxu0 0
  %1126 = vmatpush1.bf16.msra.mxu0 0
  %1127 = vmatprep.subr.bf16.mxu0 0
  %1128 = vmatpush1.bf16.msra.mxu0 0
  %1129 = vmatprep.subr.bf16.mxu0 0
  %1130 = vmatpush1.bf16.msra.mxu0 0
  %1131 = vmatprep.subr.bf16.mxu0 0
  %1132 = vmatpush1.bf16.msra.mxu0 0
  %1133 = vmatprep.subr.bf16.mxu0 0
  %1134 = vmatpush1.bf16.msra.mxu0 0
  %1135 = vmatprep.mubr.bf16.mxu0 0
  %1136 = vmatmul.mubr.bf16.gmra.mrb[0].mxu0 %v1048
  %v1137 = vpop.f32.mrb[0].mxu0
  %v1138 = vadd.f32 0.0, %v1137
  %v1139 = vpop.f32.mrb[0].mxu0
  %v1140 = vpop.f32.mrb[0].mxu0
  %v1141 = vadd.f32 0.0, %v1140
  %v1142 = vpop.f32.mrb[0].mxu0
  %1143 = vdwg.mxu0
  %v1148 = vunpack.c.l.b16 %v965
  %v1149 = vunpack.c.l.b16 %v966
  %v1150 = vunpack.c.l.b16 %v967
  %v1151 = vunpack.c.l.b16 %v968
  %v1152 = vpack.c.b16 %v1149, %v1148
  %v1153 = vpack.c.b16 %v1151, %v1150
  %1156 = vmatprep.subr.bf16.mxu0 0
  %1157 = vmatpush1.bf16.msra.mxu0 %v1152
  %1158 = vmatprep.subr.bf16.mxu0 0
  %1159 = vmatpush1.bf16.msra.mxu0 %v1153
  %1160 = vmatprep.subr.bf16.mxu0 0
  %1161 = vmatpush1.bf16.msra.mxu0 0
  %1162 = vmatprep.subr.bf16.mxu0 0
  %1163 = vmatpush1.bf16.msra.mxu0 0
  %1164 = vmatprep.subr.bf16.mxu0 0
  %1165 = vmatpush1.bf16.msra.mxu0 0
  %1166 = vmatprep.subr.bf16.mxu0 0
  %1167 = vmatpush1.bf16.msra.mxu0 0
  %1168 = vmatprep.subr.bf16.mxu0 0
  %1169 = vmatpush1.bf16.msra.mxu0 0
  %1170 = vmatprep.subr.bf16.mxu0 0
  %1171 = vmatpush1.bf16.msra.mxu0 0
  %1172 = vmatprep.subr.bf16.mxu0 0
  %1173 = vmatpush1.bf16.msra.mxu0 0
  %1174 = vmatprep.subr.bf16.mxu0 0
  %1175 = vmatpush1.bf16.msra.mxu0 0
  %1176 = vmatprep.subr.bf16.mxu0 0
  %1177 = vmatpush1.bf16.msra.mxu0 0
  %1178 = vmatprep.subr.bf16.mxu0 0
  %1179 = vmatpush1.bf16.msra.mxu0 0
  %1180 = vmatprep.subr.bf16.mxu0 0
  %1181 = vmatpush1.bf16.msra.mxu0 0
  %1182 = vmatprep.subr.bf16.mxu0 0
  %1183 = vmatpush1.bf16.msra.mxu0 0
  %1184 = vmatprep.subr.bf16.mxu0 0
  %1185 = vmatpush1.bf16.msra.mxu0 0
  %1186 = vmatprep.subr.bf16.mxu0 0
  %1187 = vmatpush1.bf16.msra.mxu0 0
  %1188 = vmatprep.mubr.bf16.mxu0 0
  %1189 = vmatmul.mubr.bf16.gmra.mrb[0].mxu0 %v1048
  %v1190 = vpop.f32.mrb[0].mxu0
  %v1191 = vadd.f32 0.0, %v1190
  %v1192 = vpop.f32.mrb[0].mxu0
  %v1193 = vpop.f32.mrb[0].mxu0
  %v1194 = vadd.f32 0.0, %v1193
  %v1195 = vpop.f32.mrb[0].mxu0
  %1196 = vdwg.mxu0
  %v1197 = vmul.f32 %v1085, %v171
  %v1198 = vmul.f32 %v1088, %v172
  %v1199 = vmul.f32 %v1085, %v173
  %v1200 = vmul.f32 %v1088, %v174
  %v1201 = vmul.f32 %v1085, %v175
  %v1202 = vmul.f32 %v1088, %v176
  %v1203 = vmul.f32 %v1085, %v177
  %v1204 = vmul.f32 %v1088, %v178
  %v1205 = vpack.c.bf16 %v1198, %v1197
  %v1206 = vpack.c.bf16 %v1200, %v1199
  %v1207 = vpack.c.bf16 %v1202, %v1201
  %v1208 = vpack.c.bf16 %v1204, %v1203
  %v1209 = vpack.c.bf16 %v1141, %v1138
  %v1211 = vsel %vm216, %v1205, 0
  %v1214 = vsel %vm216, %v1206, 0
  %v1217 = vsel %vm216, %v1207, 0
  %v1220 = vsel %vm216, %v1208, 0
  %v1223 = vsel %vm216, %v1209, 0
  %1225 = vmatprep.subr.bf16.mxu0 0
  %1226 = vmatpush1.bf16.xpose.msra.mxu0 %v1223
  %1227 = vmatprep.subr.bf16.mxu0 0
  %1228 = vmatpush1.bf16.xpose.msra.mxu0 0
  %1229 = vmatprep.subr.bf16.mxu0 0
  %1230 = vmatpush1.bf16.xpose.msra.mxu0 0
  %1231 = vmatprep.subr.bf16.mxu0 0
  %1232 = vmatpush1.bf16.xpose.msra.mxu0 0
  %1233 = vmatprep.subr.bf16.mxu0 0
  %1234 = vmatpush1.bf16.xpose.msra.mxu0 0
  %1235 = vmatprep.subr.bf16.mxu0 0
  %1236 = vmatpush1.bf16.xpose.msra.mxu0 0
  %1237 = vmatprep.subr.bf16.mxu0 0
  %1238 = vmatpush1.bf16.xpose.msra.mxu0 0
  %1239 = vmatprep.subr.bf16.mxu0 0
  %1240 = vmatpush1.bf16.xpose.msra.mxu0 0
  %1241 = vmatprep.subr.bf16.mxu0 0
  %1242 = vmatpush1.bf16.xpose.msra.mxu0 0
  %1243 = vmatprep.subr.bf16.mxu0 0
  %1244 = vmatpush1.bf16.xpose.msra.mxu0 0
  %1245 = vmatprep.subr.bf16.mxu0 0
  %1246 = vmatpush1.bf16.xpose.msra.mxu0 0
  %1247 = vmatprep.subr.bf16.mxu0 0
  %1248 = vmatpush1.bf16.xpose.msra.mxu0 0
  %1249 = vmatprep.subr.bf16.mxu0 0
  %1250 = vmatpush1.bf16.xpose.msra.mxu0 0
  %1251 = vmatprep.subr.bf16.mxu0 0
  %1252 = vmatpush1.bf16.xpose.msra.mxu0 0
  %1253 = vmatprep.subr.bf16.mxu0 0
  %1254 = vmatpush1.bf16.xpose.msra.mxu0 0
  %1255 = vmatprep.subr.bf16.mxu0 0
  %1256 = vmatpush1.bf16.xpose.msra.mxu0 0
  %1257 = vmatprep.mubr.bf16.mxu0 0
  %1258 = vmatmul.mubr.bf16.gmra.mrb[0].mxu0 %v1211
  %v1259 = vpop.f32.mrb[0].mxu0
  %v1260 = vadd.f32 %v147, %v1259
  %v1261 = vpop.f32.mrb[0].mxu0
  %v1262 = vpop.f32.mrb[0].mxu0
  %v1263 = vadd.f32 %v148, %v1262
  %v1264 = vpop.f32.mrb[0].mxu0
  %1265 = vmatprep.mubr.bf16.mxu0 0
  %1266 = vmatmul.mubr.bf16.gmra.mrb[0].mxu0 %v1214
  %v1267 = vpop.f32.mrb[0].mxu0
  %v1268 = vadd.f32 %v147, %v1267
  %v1269 = vpop.f32.mrb[0].mxu0
  %v1270 = vpop.f32.mrb[0].mxu0
  %v1271 = vadd.f32 %v148, %v1270
  %v1272 = vpop.f32.mrb[0].mxu0
  %1273 = vmatprep.mubr.bf16.mxu0 0
  %1274 = vmatmul.mubr.bf16.gmra.mrb[0].mxu0 %v1217
  %v1275 = vpop.f32.mrb[0].mxu0
  %v1276 = vadd.f32 %v147, %v1275
  %v1277 = vpop.f32.mrb[0].mxu0
  %v1278 = vpop.f32.mrb[0].mxu0
  %v1279 = vadd.f32 %v148, %v1278
  %v1280 = vpop.f32.mrb[0].mxu0
  %1281 = vmatprep.mubr.bf16.mxu0 0
  %1282 = vmatmul.mubr.bf16.gmra.mrb[0].mxu0 %v1220
  %v1283 = vpop.f32.mrb[0].mxu0
  %v1284 = vadd.f32 %v147, %v1283
  %v1285 = vpop.f32.mrb[0].mxu0
  %v1286 = vpop.f32.mrb[0].mxu0
  %v1287 = vadd.f32 %v148, %v1286
  %v1288 = vpop.f32.mrb[0].mxu0
  %1289 = vdwg.mxu0
  %v1290 = vsel %vm512, %v1260, -inf
  %1291 = vmax.xlane.f32.xlu0 %v1290
  %v1292 = vpop.xlane.xlu0 %1291
  %v1293 = vsel %vm512, %v1263, -inf
  %1294 = vmax.xlane.f32.xlu0 %v1293
  %v1295 = vpop.xlane.xlu0 %1294
  %v1296 = vsel %vm512, %v1268, -inf
  %1297 = vmax.xlane.f32.xlu0 %v1296
  %v1298 = vpop.xlane.xlu0 %1297
  %v1299 = vsel %vm512, %v1271, -inf
  %1300 = vmax.xlane.f32.xlu0 %v1299
  %v1301 = vpop.xlane.xlu0 %1300
  %v1302 = vsel %vm512, %v1276, -inf
  %1303 = vmax.xlane.f32.xlu0 %v1302
  %v1304 = vpop.xlane.xlu0 %1303
  %v1305 = vsel %vm512, %v1279, -inf
  %1306 = vmax.xlane.f32.xlu0 %v1305
  %v1307 = vpop.xlane.xlu0 %1306
  %v1308 = vsel %vm512, %v1284, -inf
  %1309 = vmax.xlane.f32.xlu0 %v1308
  %v1310 = vpop.xlane.xlu0 %1309
  %v1311 = vsel %vm512, %v1287, -inf
  %1312 = vmax.xlane.f32.xlu0 %v1311
  %v1313 = vpop.xlane.xlu0 %1312
  %v1314 = vsub.f32 %v1260, %v1292
  %v1315 = vsub.f32 %v1263, %v1295
  %v1316 = vsub.f32 %v1268, %v1298
  %v1317 = vsub.f32 %v1271, %v1301
  %v1318 = vsub.f32 %v1276, %v1304
  %v1319 = vsub.f32 %v1279, %v1307
  %v1320 = vsub.f32 %v1284, %v1310
  %v1321 = vsub.f32 %v1287, %v1313
  %v1322 = vmul.f32 %v1314, 1.442695
  %v1323 = vpow.pop %v1322
  %v1324 = vmul.f32 %v1315, 1.442695
  %v1325 = vpow.pop %v1324
  %v1326 = vmul.f32 %v1316, 1.442695
  %v1327 = vpow.pop %v1326
  %v1328 = vmul.f32 %v1317, 1.442695
  %v1329 = vpow.pop %v1328
  %v1330 = vmul.f32 %v1318, 1.442695
  %v1331 = vpow.pop %v1330
  %v1332 = vmul.f32 %v1319, 1.442695
  %v1333 = vpow.pop %v1332
  %v1334 = vmul.f32 %v1320, 1.442695
  %v1335 = vpow.pop %v1334
  %v1336 = vmul.f32 %v1321, 1.442695
  %v1337 = vpow.pop %v1336
  %v1338 = vsel %vm512, %v1323, 0.0
  %1339 = vadd.xlane.f32.xlu0 %v1338
  %v1340 = vpop.xlane.xlu0 %1339
  %v1341 = vsel %vm512, %v1325, 0.0
  %1342 = vadd.xlane.f32.xlu0 %v1341
  %v1343 = vpop.xlane.xlu0 %1342
  %v1344 = vsel %vm512, %v1327, 0.0
  %1345 = vadd.xlane.f32.xlu0 %v1344
  %v1346 = vpop.xlane.xlu0 %1345
  %v1347 = vsel %vm512, %v1329, 0.0
  %1348 = vadd.xlane.f32.xlu0 %v1347
  %v1349 = vpop.xlane.xlu0 %1348
  %v1350 = vsel %vm512, %v1331, 0.0
  %1351 = vadd.xlane.f32.xlu0 %v1350
  %v1352 = vpop.xlane.xlu0 %1351
  %v1353 = vsel %vm512, %v1333, 0.0
  %1354 = vadd.xlane.f32.xlu0 %v1353
  %v1355 = vpop.xlane.xlu0 %1354
  %v1356 = vsel %vm512, %v1335, 0.0
  %1357 = vadd.xlane.f32.xlu0 %v1356
  %v1358 = vpop.xlane.xlu0 %1357
  %v1359 = vsel %vm512, %v1337, 0.0
  %1360 = vadd.xlane.f32.xlu0 %v1359
  %v1361 = vpop.xlane.xlu0 %1360
  %v1362 = vrcp.pop %v1340
  %v1363 = vrcp.pop %v1343
  %v1364 = vrcp.pop %v1346
  %v1365 = vrcp.pop %v1349
  %v1366 = vrcp.pop %v1352
  %v1367 = vrcp.pop %v1355
  %v1368 = vrcp.pop %v1358
  %v1369 = vrcp.pop %v1361
  %v1370 = vmul.f32 %v1323, %v1362
  %v1371 = vmul.f32 %v1325, %v1363
  %v1372 = vmul.f32 %v1327, %v1364
  %v1373 = vmul.f32 %v1329, %v1365
  %v1374 = vmul.f32 %v1331, %v1366
  %v1375 = vmul.f32 %v1333, %v1367
  %v1376 = vmul.f32 %v1335, %v1368
  %v1377 = vmul.f32 %v1337, %v1369
  %v1378 = vpack.c.bf16 %v1371, %v1370
  %v1379 = vpack.c.bf16 %v1373, %v1372
  %v1380 = vpack.c.bf16 %v1375, %v1374
  %v1381 = vpack.c.bf16 %v1377, %v1376
  %v1382 = vpack.c.bf16 %v1194, %v1191
  %v1384 = vsel %vm512, %v1378, 0
  %v1387 = vsel %vm512, %v1379, 0
  %v1390 = vsel %vm512, %v1380, 0
  %v1393 = vsel %vm512, %v1381, 0
  %1395 = vmatprep.subr.bf16.mxu0 0
  %1396 = vmatpush1.bf16.msra.mxu0 %v1382
  %1397 = vmatprep.subr.bf16.mxu0 0
  %1398 = vmatpush1.bf16.msra.mxu0 0
  %1399 = vmatprep.subr.bf16.mxu0 0
  %1400 = vmatpush1.bf16.msra.mxu0 0
  %1401 = vmatprep.subr.bf16.mxu0 0
  %1402 = vmatpush1.bf16.msra.mxu0 0
  %1403 = vmatprep.subr.bf16.mxu0 0
  %1404 = vmatpush1.bf16.msra.mxu0 0
  %1405 = vmatprep.subr.bf16.mxu0 0
  %1406 = vmatpush1.bf16.msra.mxu0 0
  %1407 = vmatprep.subr.bf16.mxu0 0
  %1408 = vmatpush1.bf16.msra.mxu0 0
  %1409 = vmatprep.subr.bf16.mxu0 0
  %1410 = vmatpush1.bf16.msra.mxu0 0
  %1411 = vmatprep.subr.bf16.mxu0 0
  %1412 = vmatpush1.bf16.msra.mxu0 0
  %1413 = vmatprep.subr.bf16.mxu0 0
  %1414 = vmatpush1.bf16.msra.mxu0 0
  %1415 = vmatprep.subr.bf16.mxu0 0
  %1416 = vmatpush1.bf16.msra.mxu0 0
  %1417 = vmatprep.subr.bf16.mxu0 0
  %1418 = vmatpush1.bf16.msra.mxu0 0
  %1419 = vmatprep.subr.bf16.mxu0 0
  %1420 = vmatpush1.bf16.msra.mxu0 0
  %1421 = vmatprep.subr.bf16.mxu0 0
  %1422 = vmatpush1.bf16.msra.mxu0 0
  %1423 = vmatprep.subr.bf16.mxu0 0
  %1424 = vmatpush1.bf16.msra.mxu0 0
  %1425 = vmatprep.subr.bf16.mxu0 0
  %1426 = vmatpush1.bf16.msra.mxu0 0
  %1427 = vmatprep.mubr.bf16.mxu0 0
  %1428 = vmatmul.mubr.bf16.gmra.mrb[0].mxu0 %v1384
  %v1429 = vpop.f32.mrb[0].mxu0
  %v1430 = vadd.f32 0.0, %v1429
  %v1431 = vpop.f32.mrb[0].mxu0
  %v1432 = vpop.f32.mrb[0].mxu0
  %v1433 = vadd.f32 0.0, %v1432
  %v1434 = vpop.f32.mrb[0].mxu0
  %1435 = vmatprep.mubr.bf16.mxu0 0
  %1436 = vmatmul.mubr.bf16.gmra.mrb[0].mxu0 %v1387
  %v1437 = vpop.f32.mrb[0].mxu0
  %v1438 = vadd.f32 0.0, %v1437
  %v1439 = vpop.f32.mrb[0].mxu0
  %v1440 = vpop.f32.mrb[0].mxu0
  %v1441 = vadd.f32 0.0, %v1440
  %v1442 = vpop.f32.mrb[0].mxu0
  %1443 = vmatprep.mubr.bf16.mxu0 0
  %1444 = vmatmul.mubr.bf16.gmra.mrb[0].mxu0 %v1390
  %v1445 = vpop.f32.mrb[0].mxu0
  %v1446 = vadd.f32 0.0, %v1445
  %v1447 = vpop.f32.mrb[0].mxu0
  %v1448 = vpop.f32.mrb[0].mxu0
  %v1449 = vadd.f32 0.0, %v1448
  %v1450 = vpop.f32.mrb[0].mxu0
  %1451 = vmatprep.mubr.bf16.mxu0 0
  %1452 = vmatmul.mubr.bf16.gmra.mrb[0].mxu0 %v1393
  %v1453 = vpop.f32.mrb[0].mxu0
  %v1454 = vadd.f32 0.0, %v1453
  %v1455 = vpop.f32.mrb[0].mxu0
  %v1456 = vpop.f32.mrb[0].mxu0
  %v1457 = vadd.f32 0.0, %v1456
  %v1458 = vpop.f32.mrb[0].mxu0
  %1459 = vdwg.mxu0
  %v1460 = vmul.f32 %v1430, %v171
  %v1461 = vmul.f32 %v1433, %v172
  %v1462 = vmul.f32 %v1438, %v173
  %v1463 = vmul.f32 %v1441, %v174
  %v1464 = vmul.f32 %v1446, %v175
  %v1465 = vmul.f32 %v1449, %v176
  %v1466 = vmul.f32 %v1454, %v177
  %v1467 = vmul.f32 %v1457, %v178
  %v1468 = vadd.f32 %v1460, %v1462
  %v1469 = vadd.f32 %v1461, %v1463
  %v1470 = vadd.f32 %v1468, %v1464
  %v1471 = vadd.f32 %v1469, %v1465
  %v1472 = vadd.f32 %v1470, %v1466
  %v1473 = vadd.f32 %v1471, %v1467
  %v1474 = vpack.c.bf16 %v1473, %v1472
  %v1475 = vlaneseq
  %v1476 = vshrl.u32 %v1475, 7
  %v1477 = vsub.s32 4, %v1476
  %v1478 = vrot.slane %v995, %v1477
  %v1483 = vunpack.c.l.b16 %v969
  %v1484 = vunpack.c.l.b16 %v970
  %v1485 = vunpack.c.l.b16 %v971
  %v1486 = vunpack.c.l.b16 %v972
  %v1487 = vpack.c.b16 %v1484, %v1483
  %v1488 = vpack.c.b16 %v1486, %v1485
  %v1492 = vsel %vm216, %v1474, 0
  %1494 = vmatprep.subr.bf16.mxu0 0
  %1495 = vmatpush1.bf16.msra.mxu0 %v1487
  %1496 = vmatprep.subr.bf16.mxu0 0
  %1497 = vmatpush1.bf16.msra.mxu0 %v1488
  %1498 = vmatprep.subr.bf16.mxu0 0
  %1499 = vmatpush1.bf16.msra.mxu0 0
  %1500 = vmatprep.subr.bf16.mxu0 0
  %1501 = vmatpush1.bf16.msra.mxu0 0
  %1502 = vmatprep.subr.bf16.mxu0 0
  %1503 = vmatpush1.bf16.msra.mxu0 0
  %1504 = vmatprep.subr.bf16.mxu0 0
  %1505 = vmatpush1.bf16.msra.mxu0 0
  %1506 = vmatprep.subr.bf16.mxu0 0
  %1507 = vmatpush1.bf16.msra.mxu0 0
  %1508 = vmatprep.subr.bf16.mxu0 0
  %1509 = vmatpush1.bf16.msra.mxu0 0
  %1510 = vmatprep.subr.bf16.mxu0 0
  %1511 = vmatpush1.bf16.msra.mxu0 0
  %1512 = vmatprep.subr.bf16.mxu0 0
  %1513 = vmatpush1.bf16.msra.mxu0 0
  %1514 = vmatprep.subr.bf16.mxu0 0
  %1515 = vmatpush1.bf16.msra.mxu0 0
  %1516 = vmatprep.subr.bf16.mxu0 0
  %1517 = vmatpush1.bf16.msra.mxu0 0
  %1518 = vmatprep.subr.bf16.mxu0 0
  %1519 = vmatpush1.bf16.msra.mxu0 0
  %1520 = vmatprep.subr.bf16.mxu0 0
  %1521 = vmatpush1.bf16.msra.mxu0 0
  %1522 = vmatprep.subr.bf16.mxu0 0
  %1523 = vmatpush1.bf16.msra.mxu0 0
  %1524 = vmatprep.subr.bf16.mxu0 0
  %1525 = vmatpush1.bf16.msra.mxu0 0
  %1526 = vmatprep.mubr.bf16.mxu0 0
  %1527 = vmatmul.mubr.bf16.gmra.mrb[0].mxu0 %v1492
  %v1528 = vpop.f32.mrb[0].mxu0
  %v1529 = vadd.f32 %v1478, %v1528
  %v1530 = vpop.f32.mrb[0].mxu0
  %v1531 = vpop.f32.mrb[0].mxu0
  %v1532 = vadd.f32 %v1478, %v1531
  %v1533 = vpop.f32.mrb[0].mxu0
  %1534 = vdwg.mxu0
  %v1535 = vadd.f32 %v955, %v1529
  %v1536 = vadd.f32 %v956, %v1532
  %v1537 = vsel %vm216, %v1535, 0.0
  %1538 = vadd.xlane.f32.xlu0 %v1537
  %v1539 = vpop.xlane.xlu0 %1538
  %v1540 = vsel %vm216, %v1536, 0.0
  %1541 = vadd.xlane.f32.xlu0 %v1540
  %v1542 = vpop.xlane.xlu0 %1541
  %v1543 = vmul.f32 %v1539, %v223
  %v1544 = vmul.f32 %v1542, %v223
  %v1545 = vsub.f32 %v1535, %v1543
  %v1546 = vsub.f32 %v1536, %v1544
  %v1547 = vmul.f32 %v1545, %v1545
  %v1548 = vmul.f32 %v1546, %v1546
  %v1549 = vsel %vm216, %v1547, 0.0
  %1550 = vadd.xlane.f32.xlu0 %v1549
  %v1551 = vpop.xlane.xlu0 %1550
  %v1552 = vsel %vm216, %v1548, 0.0
  %1553 = vadd.xlane.f32.xlu0 %v1552
  %v1554 = vpop.xlane.xlu0 %1553
  %v1555 = vmul.f32 %v1551, %v223
  %v1556 = vmul.f32 %v1554, %v223
  %v1557 = vadd.f32 %v1555, 1e-05
  %v1558 = vadd.f32 %v1556, 1e-05
  %v1559 = vrsqrt.pop %v1557
  %v1560 = vrsqrt.pop %v1558
  %v1561 = vmul.f32 %v1545, %v1559
  %v1562 = vmul.f32 %v1546, %v1560
  %v1563 = vlaneseq
  %v1564 = vshrl.u32 %v1563, 7
  %v1565 = vsub.s32 2, %v1564
  %v1566 = vrot.slane %v995, %v1565
  %v1567 = vmul.f32 %v1561, %v1566
  %v1568 = vmul.f32 %v1562, %v1566
  %v1569 = vlaneseq
  %v1570 = vshrl.u32 %v1569, 7
  %v1571 = vsub.s32 3, %v1570
  %v1572 = vrot.slane %v995, %v1571
  %v1573 = vadd.f32 %v1567, %v1572
  %v1574 = vadd.f32 %v1568, %v1572
  %v1575 = vpack.c.bf16 %v1574, %v1573
  %v1576 = vlaneseq
  %v1577 = vshrl.u32 %v1576, 7
  %v1578 = vsub.s32 6, %v1577
  %v1579 = vrot.slane %v995, %v1578
  %v1584 = vunpack.c.l.b16 %v990
  %v1585 = vunpack.c.l.b16 %v991
  %v1586 = vunpack.c.l.b16 %v992
  %v1587 = vunpack.c.l.b16 %v993
  %v1588 = vpack.c.b16 %v1585, %v1584
  %v1589 = vpack.c.b16 %v1587, %v1586
  %v1593 = vsel %vm216, %v1575, 0
  %1595 = vmatprep.subr.bf16.mxu0 0
  %1596 = vmatpush1.bf16.msra.mxu0 %v1588
  %1597 = vmatprep.subr.bf16.mxu0 0
  %1598 = vmatpush1.bf16.msra.mxu0 %v1589
  %1599 = vmatprep.subr.bf16.mxu0 0
  %1600 = vmatpush1.bf16.msra.mxu0 0
  %1601 = vmatprep.subr.bf16.mxu0 0
  %1602 = vmatpush1.bf16.msra.mxu0 0
  %1603 = vmatprep.subr.bf16.mxu0 0
  %1604 = vmatpush1.bf16.msra.mxu0 0
  %1605 = vmatprep.subr.bf16.mxu0 0
  %1606 = vmatpush1.bf16.msra.mxu0 0
  %1607 = vmatprep.subr.bf16.mxu0 0
  %1608 = vmatpush1.bf16.msra.mxu0 0
  %1609 = vmatprep.subr.bf16.mxu0 0
  %1610 = vmatpush1.bf16.msra.mxu0 0
  %1611 = vmatprep.subr.bf16.mxu0 0
  %1612 = vmatpush1.bf16.msra.mxu0 0
  %1613 = vmatprep.subr.bf16.mxu0 0
  %1614 = vmatpush1.bf16.msra.mxu0 0
  %1615 = vmatprep.subr.bf16.mxu0 0
  %1616 = vmatpush1.bf16.msra.mxu0 0
  %1617 = vmatprep.subr.bf16.mxu0 0
  %1618 = vmatpush1.bf16.msra.mxu0 0
  %1619 = vmatprep.subr.bf16.mxu0 0
  %1620 = vmatpush1.bf16.msra.mxu0 0
  %1621 = vmatprep.subr.bf16.mxu0 0
  %1622 = vmatpush1.bf16.msra.mxu0 0
  %1623 = vmatprep.subr.bf16.mxu0 0
  %1624 = vmatpush1.bf16.msra.mxu0 0
  %1625 = vmatprep.subr.bf16.mxu0 0
  %1626 = vmatpush1.bf16.msra.mxu0 0
  %1627 = vmatprep.mubr.bf16.mxu0 0
  %1628 = vmatmul.mubr.bf16.gmra.mrb[0].mxu0 %v1593
  %v1629 = vpop.f32.mrb[0].mxu0
  %v1630 = vadd.f32 %v1579, %v1629
  %v1631 = vpop.f32.mrb[0].mxu0
  %v1632 = vpop.f32.mrb[0].mxu0
  %v1633 = vadd.f32 %v1579, %v1632
  %v1634 = vpop.f32.mrb[0].mxu0
  %1635 = vdwg.mxu0
  %v1636 = vmax.f32 %v1630, 0.0
  %v1637 = vmax.f32 %v1633, 0.0
  %v1638 = vpack.c.bf16 %v1637, %v1636
  %v1639 = vlaneseq
  %v1640 = vshrl.u32 %v1639, 7
  %v1641 = vsub.s32 5, %v1640
  %v1642 = vrot.slane %v995, %v1641
  %v1659 = vunpack.c.l.b16 %v973
  %v1660 = vunpack.c.l.b16 %v974
  %v1661 = vunpack.c.l.b16 %v975
  %v1662 = vunpack.c.l.b16 %v976
  %v1663 = vunpack.c.l.b16 %v977
  %v1664 = vunpack.c.l.b16 %v978
  %v1665 = vunpack.c.l.b16 %v979
  %v1666 = vunpack.c.l.b16 %v980
  %v1667 = vunpack.c.l.b16 %v981
  %v1668 = vunpack.c.l.b16 %v982
  %v1669 = vunpack.c.l.b16 %v983
  %v1670 = vunpack.c.l.b16 %v984
  %v1671 = vunpack.c.l.b16 %v985
  %v1672 = vunpack.c.l.b16 %v986
  %v1673 = vunpack.c.l.b16 %v987
  %v1674 = vunpack.c.l.b16 %v988
  %v1675 = vpack.c.b16 %v1660, %v1659
  %v1676 = vpack.c.b16 %v1662, %v1661
  %v1677 = vpack.c.b16 %v1664, %v1663
  %v1678 = vpack.c.b16 %v1666, %v1665
  %v1679 = vpack.c.b16 %v1668, %v1667
  %v1680 = vpack.c.b16 %v1670, %v1669
  %v1681 = vpack.c.b16 %v1672, %v1671
  %v1682 = vpack.c.b16 %v1674, %v1673
  %1691 = vmatprep.subr.bf16.mxu0 0
  %1692 = vmatpush1.bf16.msra.mxu0 %v1675
  %1693 = vmatprep.subr.bf16.mxu0 0
  %1694 = vmatpush1.bf16.msra.mxu0 %v1676
  %1695 = vmatprep.subr.bf16.mxu0 0
  %1696 = vmatpush1.bf16.msra.mxu0 %v1677
  %1697 = vmatprep.subr.bf16.mxu0 0
  %1698 = vmatpush1.bf16.msra.mxu0 %v1678
  %1699 = vmatprep.subr.bf16.mxu0 0
  %1700 = vmatpush1.bf16.msra.mxu0 %v1679
  %1701 = vmatprep.subr.bf16.mxu0 0
  %1702 = vmatpush1.bf16.msra.mxu0 %v1680
  %1703 = vmatprep.subr.bf16.mxu0 0
  %1704 = vmatpush1.bf16.msra.mxu0 %v1681
  %1705 = vmatprep.subr.bf16.mxu0 0
  %1706 = vmatpush1.bf16.msra.mxu0 %v1682
  %1707 = vmatprep.subr.bf16.mxu0 0
  %1708 = vmatpush1.bf16.msra.mxu0 0
  %1709 = vmatprep.subr.bf16.mxu0 0
  %1710 = vmatpush1.bf16.msra.mxu0 0
  %1711 = vmatprep.subr.bf16.mxu0 0
  %1712 = vmatpush1.bf16.msra.mxu0 0
  %1713 = vmatprep.subr.bf16.mxu0 0
  %1714 = vmatpush1.bf16.msra.mxu0 0
  %1715 = vmatprep.subr.bf16.mxu0 0
  %1716 = vmatpush1.bf16.msra.mxu0 0
  %1717 = vmatprep.subr.bf16.mxu0 0
  %1718 = vmatpush1.bf16.msra.mxu0 0
  %1719 = vmatprep.subr.bf16.mxu0 0
  %1720 = vmatpush1.bf16.msra.mxu0 0
  %1721 = vmatprep.subr.bf16.mxu0 0
  %1722 = vmatpush1.bf16.msra.mxu0 0
  %1723 = vmatprep.mubr.bf16.mxu0 0
  %1724 = vmatmul.mubr.bf16.gmra.mrb[0].mxu0 %v1638
  %v1725 = vpop.f32.mrb[0].mxu0
  %v1726 = vadd.f32 %v1642, %v1725
  %v1727 = vpop.f32.mrb[0].mxu0
  %v1728 = vpop.f32.mrb[0].mxu0
  %v1729 = vadd.f32 %v1642, %v1728
  %v1730 = vpop.f32.mrb[0].mxu0
  %1731 = vdwg.mxu0
  %v1732 = vadd.f32 %v1535, %v1726
  %v1733 = vadd.f32 %v1536, %v1729
  %s1734 = scalar_lea.vmem %s3, 16
  %v1735 = vld [vmem:[%s1734] sm:$0xff]
  %v1736 = vsel %vm216, %v1732, 0.0
  %1737 = vadd.xlane.f32.xlu0 %v1736
  %v1738 = vpop.xlane.xlu0 %1737
  %v1739 = vsel %vm216, %v1733, 0.0
  %1740 = vadd.xlane.f32.xlu0 %v1739
  %v1741 = vpop.xlane.xlu0 %1740
  %v1742 = vmul.f32 %v1738, %v223
  %v1743 = vmul.f32 %v1741, %v223
  %v1744 = vsub.f32 %v1732, %v1742
  %v1745 = vsub.f32 %v1733, %v1743
  %v1746 = vmul.f32 %v1744, %v1744
  %v1747 = vmul.f32 %v1745, %v1745
  %v1748 = vsel %vm216, %v1746, 0.0
  %1749 = vadd.xlane.f32.xlu0 %v1748
  %v1750 = vpop.xlane.xlu0 %1749
  %v1751 = vsel %vm216, %v1747, 0.0
  %1752 = vadd.xlane.f32.xlu0 %v1751
  %v1753 = vpop.xlane.xlu0 %1752
  %v1754 = vmul.f32 %v1750, %v223
  %v1755 = vmul.f32 %v1753, %v223
  %v1756 = vadd.f32 %v1754, 1e-05
  %v1757 = vadd.f32 %v1755, 1e-05
  %v1758 = vrsqrt.pop %v1756
  %v1759 = vrsqrt.pop %v1757
  %v1760 = vmul.f32 %v1744, %v1758
  %v1761 = vmul.f32 %v1745, %v1759
  %v1762 = vlaneseq
  %v1763 = vshrl.u32 %v1762, 7
  %v1764 = vsub.s32 0, %v1763
  %v1765 = vrot.slane %v1735, %v1764
  %v1766 = vmul.f32 %v1760, %v1765
  %v1767 = vmul.f32 %v1761, %v1765
  %v1768 = vlaneseq
  %v1769 = vshrl.u32 %v1768, 7
  %v1770 = vsub.s32 1, %v1769
  %v1771 = vrot.slane %v1735, %v1770
  %v1772 = vadd.f32 %v1766, %v1771
  %v1773 = vadd.f32 %v1767, %v1771
  %s1774 = scalar_lea.vmem %s2, 32
  %v1775 = vld [vmem:[%s1774] sm:$0xf]
  %v1776 = vld [vmem:[%s1774 + $0x4] sm:$0xf]
  %v1777 = vld [vmem:[%s1774 + $0x8] sm:$0xf]
  %v1778 = vld [vmem:[%s1774 + $0xc] sm:$0xf]
  %v1779 = vpack.c.bf16 %v1773, %v1772
  %v1780 = vlaneseq
  %v1781 = vshrl.u32 %v1780, 7
  %v1782 = vsub.s32 2, %v1781
  %v1783 = vrot.slane %v1735, %v1782
  %v1788 = vunpack.c.l.b16 %v1775
  %v1789 = vunpack.c.l.b16 %v1776
  %v1790 = vunpack.c.l.b16 %v1777
  %v1791 = vunpack.c.l.b16 %v1778
  %v1792 = vpack.c.b16 %v1789, %v1788
  %v1793 = vpack.c.b16 %v1791, %v1790
  %v1797 = vsel %vm216, %v1779, 0
  %1799 = vmatprep.subr.bf16.mxu0 0
  %1800 = vmatpush1.bf16.msra.mxu0 %v1792
  %1801 = vmatprep.subr.bf16.mxu0 0
  %1802 = vmatpush1.bf16.msra.mxu0 %v1793
  %1803 = vmatprep.subr.bf16.mxu0 0
  %1804 = vmatpush1.bf16.msra.mxu0 0
  %1805 = vmatprep.subr.bf16.mxu0 0
  %1806 = vmatpush1.bf16.msra.mxu0 0
  %1807 = vmatprep.subr.bf16.mxu0 0
  %1808 = vmatpush1.bf16.msra.mxu0 0
  %1809 = vmatprep.subr.bf16.mxu0 0
  %1810 = vmatpush1.bf16.msra.mxu0 0
  %1811 = vmatprep.subr.bf16.mxu0 0
  %1812 = vmatpush1.bf16.msra.mxu0 0
  %1813 = vmatprep.subr.bf16.mxu0 0
  %1814 = vmatpush1.bf16.msra.mxu0 0
  %1815 = vmatprep.subr.bf16.mxu0 0
  %1816 = vmatpush1.bf16.msra.mxu0 0
  %1817 = vmatprep.subr.bf16.mxu0 0
  %1818 = vmatpush1.bf16.msra.mxu0 0
  %1819 = vmatprep.subr.bf16.mxu0 0
  %1820 = vmatpush1.bf16.msra.mxu0 0
  %1821 = vmatprep.subr.bf16.mxu0 0
  %1822 = vmatpush1.bf16.msra.mxu0 0
  %1823 = vmatprep.subr.bf16.mxu0 0
  %1824 = vmatpush1.bf16.msra.mxu0 0
  %1825 = vmatprep.subr.bf16.mxu0 0
  %1826 = vmatpush1.bf16.msra.mxu0 0
  %1827 = vmatprep.subr.bf16.mxu0 0
  %1828 = vmatpush1.bf16.msra.mxu0 0
  %1829 = vmatprep.subr.bf16.mxu0 0
  %1830 = vmatpush1.bf16.msra.mxu0 0
  %1831 = vmatprep.mubr.bf16.mxu0 0
  %1832 = vmatmul.mubr.bf16.gmra.mrb[0].mxu0 %v1797
  %v1833 = vpop.f32.mrb[0].mxu0
  %v1834 = vadd.f32 %v1783, %v1833
  %v1835 = vpop.f32.mrb[0].mxu0
  %v1836 = vpop.f32.mrb[0].mxu0
  %v1837 = vadd.f32 %v1783, %v1836
  %v1838 = vpop.f32.mrb[0].mxu0
  %1839 = vdwg.mxu0
  %1840 = vst [vmem:[%s4] sm:$0xff] %v1834
  %1841 = vst [vmem:[%s4 + $0x8] sm:$0xff] %v1837
  // Predicated region
  $region18: #{transformer_forward.1} parent=0 // pred_check
    _
  $region19: #{transformer_forward.1} parent=0 // pred_check_branch
    %1843 = sbr.rel (0) target = $region21
  $region20: #{transformer_forward.1} parent=0 // pred_region
    _
  $region21: #{transformer_forward.1} parent=0 // pred_fallthru
    _
  // Predicated region
  $region22: #{transformer_forward.1} parent=0 // pred_check
    _
  $region23: #{transformer_forward.1} parent=0 // pred_check_branch
    %1845 = sbr.rel (0) target = $region25
  $region24: #{transformer_forward.1} parent=0 // pred_region
    _
  $region25: #{transformer_forward.1} parent=0 // pred_fallthru
    _

</llo_original>
